<compile_context>
chip_gen: v5e
topology: v5e:2x2
jax: 0.10.0
libtpu: 0.0.40
codegen_flags: <defaults>
</compile_context>

<pallas_src>
import functools

import jax
import jax.numpy as jnp
from jax.experimental import pallas as pl
from jax.experimental.pallas import tpu as pltpu

HIDDEN = 256    # hidden width of the PyTorch featnet
TILE_B = 512    # batch columns per grid step (multiple of 256 for v6e/v7x MXU rows)
SUBLANE = 8     # f32 sublane height: nacts is padded up to a multiple of this


def _round_up(n, m):
    return ((n + m - 1) // m) * m


def policy_net_kernel(xt_ref, w1t_ref, b1_ref, w2t_ref, b2_ref, w3t_ref, b3_ref, ot_ref):
    """Fused 3-layer MLP forward for one batch tile, feature-major.

    Every matmul is a plain (out,in) @ (in, TILE_B) MXU op with bf16 operands and
    f32 accumulation; bias add + ReLU stay in f32 on the VPU; the final store is a
    lane-dense (nacts_p, TILE_B) f32 block.
    """
    xt = xt_ref[...]                                                    # (state_dim, TILE_B) bf16
    h1 = jnp.dot(w1t_ref[...], xt, preferred_element_type=jnp.float32) + b1_ref[...]
    h1 = jnp.maximum(h1, 0.0).astype(jnp.bfloat16)                      # (HIDDEN, TILE_B)
    h2 = jnp.dot(w2t_ref[...], h1, preferred_element_type=jnp.float32) + b2_ref[...]
    h2 = jnp.maximum(h2, 0.0).astype(jnp.bfloat16)                      # (HIDDEN, TILE_B)
    ot_ref[...] = (jnp.dot(w3t_ref[...], h2, preferred_element_type=jnp.float32)
                   + b3_ref[...])                                       # (nacts_p, TILE_B) f32


@functools.partial(jax.jit, static_argnames=("nacts",))
def policy_net_forward(x, w1t, b1, w2t, b2, w3t, b3, *, nacts):
    """logits = relu(relu(x@W1^T+b1)@W2^T+b2)@W3^T+b3 via one pipelined pallas_call.

    Weights are (out, in) bf16 (PyTorch orientation); biases are (out, 1) f32 columns.
    w3t/b3 arrive pre-padded to a multiple of 8 output rows (init_policy_net_params).
    """
    B, state_dim = x.shape
    nacts_p = w3t.shape[0]

    # bf16 + feature-major input: halves streamed input bytes; the transpose is one
    # tiny XLA pass over a state_dim-wide array.
    xt = x.astype(jnp.bfloat16).T                     # (state_dim, B)

    Bp = _round_up(B, TILE_B)
    if Bp != B:                                       # pad only when misaligned
        xt = jnp.pad(xt, ((0, 0), (0, Bp - B)))

    grid = (Bp // TILE_B,)                            # v7x: >=2 (even) tiles use both TCs

    flops = 2 * Bp * (state_dim * HIDDEN + HIDDEN * HIDDEN + HIDDEN * nacts_p)
    bytes_accessed = (
        xt.size * 2                                   # streamed bf16 input
        + nacts_p * Bp * 4                            # streamed f32 logits (8 rows, not 128)
        + (w1t.size + w2t.size + w3t.size) * 2        # bf16 weights, fetched once (resident)
        + (b1.size + b2.size + b3.size) * 4           # f32 biases, resident
    )

    out_t = pl.pallas_call(
        policy_net_kernel,
        out_shape=jax.ShapeDtypeStruct((nacts_p, Bp), jnp.float32),
        grid_spec=pltpu.PrefetchScalarGridSpec(
            num_scalar_prefetch=0,
            grid=grid,
            in_specs=[
                pl.BlockSpec((state_dim, TILE_B), lambda i: (0, i)),    # x^T: streamed
                pl.BlockSpec((HIDDEN, state_dim), lambda i: (0, 0)),    # W1 (out,in): resident
                pl.BlockSpec((HIDDEN, 1), lambda i: (0, 0)),            # b1: resident
                pl.BlockSpec((HIDDEN, HIDDEN), lambda i: (0, 0)),       # W2: resident
                pl.BlockSpec((HIDDEN, 1), lambda i: (0, 0)),            # b2: resident
                pl.BlockSpec((nacts_p, HIDDEN), lambda i: (0, 0)),      # W3 (padded): resident
                pl.BlockSpec((nacts_p, 1), lambda i: (0, 0)),           # b3 (padded): resident
            ],
            out_specs=pl.BlockSpec((nacts_p, TILE_B), lambda i: (0, i)),
        ),
        compiler_params=pltpu.CompilerParams(
            dimension_semantics=("parallel",),        # batch tiles are independent
            vmem_limit_bytes=32 * 1024 * 1024,        # actual use ~2 MiB; pure headroom
        ),
        cost_estimate=pl.CostEstimate(
            flops=flops, transcendentals=0, bytes_accessed=bytes_accessed),
    )(xt, w1t, b1, w2t, b2, w3t, b3)

    return out_t[:nacts, :B].T                        # (B, nacts) f32 logits


def init_policy_net_params(key, state_dim, nacts, hidden=HIDDEN):
    """PyTorch nn.Linear-style init (uniform +/- 1/sqrt(fan_in)).

    Weights are stored in PyTorch's (out, in) orientation in bf16; biases as (out, 1)
    f32 columns.  The final layer is pre-padded (with zeros) to a multiple of 8 output
    rows so the forward pass never pads weights per call.
    """
    ks = jax.random.split(key, 6)

    def linear(kw, kb, fan_in, fan_out):
        bound = 1.0 / float(fan_in) ** 0.5
        w = jax.random.uniform(kw, (fan_out, fan_in), jnp.float32, -bound, bound)
        b = jax.random.uniform(kb, (fan_out, 1), jnp.float32, -bound, bound)
        return w, b

    w1, b1 = linear(ks[0], ks[1], state_dim, hidden)
    w2, b2 = linear(ks[2], ks[3], hidden, hidden)
    w3, b3 = linear(ks[4], ks[5], hidden, nacts)

    nacts_p = _round_up(max(nacts, SUBLANE), SUBLANE)
    w3p = jnp.zeros((nacts_p, hidden), jnp.float32).at[:nacts].set(w3)
    b3p = jnp.zeros((nacts_p, 1), jnp.float32).at[:nacts].set(b3)

    return (w1.astype(jnp.bfloat16), b1,
            w2.astype(jnp.bfloat16), b2,
            w3p.astype(jnp.bfloat16), b3p)


def reference_forward(x, w1t, b1, w2t, b2, w3t, b3, *, nacts):
    """Pure-JAX reference using the same bf16-weight / f32-accum recipe as the kernel."""
    xb = x.astype(jnp.bfloat16)
    h1 = jnp.maximum(
        jnp.dot(xb, w1t.T, preferred_element_type=jnp.float32) + b1[:, 0], 0.0)
    h2 = jnp.maximum(
        jnp.dot(h1.astype(jnp.bfloat16), w2t.T, preferred_element_type=jnp.float32) + b2[:, 0], 0.0)
    logits = jnp.dot(h2.astype(jnp.bfloat16), w3t.T,
                     preferred_element_type=jnp.float32) + b3[:, 0]
    return logits[:, :nacts]


if __name__ == "__main__":
    state_dim = 16
    nacts = 6

    key = jax.random.PRNGKey(0)
    k_params, k_small, k_big = jax.random.split(key, 3)
    params = init_policy_net_params(k_params, state_dim, nacts)

    # Small RL-style batch (pads into one tile) and a larger misaligned batch that
    # exercises padding plus a 2-tile grid (even tile count -> both v7x TCs busy).
    for k_x, batch in ((k_small, 4), (k_big, 1000)):
        x = jax.random.normal(k_x, (batch, state_dim), dtype=jnp.float32)
        logits = jax.block_until_ready(policy_net_forward(x, *params, nacts=nacts))
        ref = reference_forward(x, *params, nacts=nacts)
        assert logits.shape == (batch, nacts)
        assert jnp.allclose(logits, ref, atol=2e-3, rtol=2e-3), \
            float(jnp.max(jnp.abs(logits - ref)))

    print("KERNEL_OK")
</pallas_src>

<mosaic_0001>
module attributes {stable_mosaic.version = 11 : i64} {
  func.func @policy_net_kernel(%arg0: i32, %arg1: memref<16x512xbf16, #tpu.memory_space<vmem>>, %arg2: memref<256x16xbf16, #tpu.memory_space<vmem>>, %arg3: memref<256x1xf32, #tpu.memory_space<vmem>>, %arg4: memref<256x256xbf16, #tpu.memory_space<vmem>>, %arg5: memref<256x1xf32, #tpu.memory_space<vmem>>, %arg6: memref<8x256xbf16, #tpu.memory_space<vmem>>, %arg7: memref<8x1xf32, #tpu.memory_space<vmem>>, %arg8: memref<8x512xf32, #tpu.memory_space<vmem>>) attributes {dimension_semantics = [#tpu.dimension_semantics<parallel>], iteration_bounds = array<i64: 1>, scalar_prefetch = 0 : i64, scratch_operands = 0 : i64, tpu.core_type = #tpu.core_type<tc>, window_params = [{transform_indices = @transform_0, window_bounds = array<i64: 16, 512>}, {pipeline_mode = #tpu.pipeline_mode<synchronous>, transform_indices = @transform_1, window_bounds = array<i64: 256, 16>}, {pipeline_mode = #tpu.pipeline_mode<synchronous>, transform_indices = @transform_2, window_bounds = array<i64: 256, 1>}, {pipeline_mode = #tpu.pipeline_mode<synchronous>, transform_indices = @transform_3, window_bounds = array<i64: 256, 256>}, {pipeline_mode = #tpu.pipeline_mode<synchronous>, transform_indices = @transform_4, window_bounds = array<i64: 256, 1>}, {pipeline_mode = #tpu.pipeline_mode<synchronous>, transform_indices = @transform_5, window_bounds = array<i64: 8, 256>}, {pipeline_mode = #tpu.pipeline_mode<synchronous>, transform_indices = @transform_6, window_bounds = array<i64: 8, 1>}, {transform_indices = @transform_7, window_bounds = array<i64: 8, 512>}]} {
    %c0 = arith.constant 0 : index
    %c0_0 = arith.constant 0 : index
    %0 = vector.load %arg1[%c0, %c0_0] : memref<16x512xbf16, #tpu.memory_space<vmem>>, vector<16x512xbf16>
    %c0_1 = arith.constant 0 : index
    %c0_2 = arith.constant 0 : index
    %1 = vector.load %arg2[%c0_1, %c0_2] : memref<256x16xbf16, #tpu.memory_space<vmem>>, vector<256x16xbf16>
    %cst = arith.constant dense<0.000000e+00> : vector<256x512xf32>
    %2 = tpu.matmul %1, %0, %cst {dimension_numbers = #tpu.dot_dimension_numbers<[1], [0], [0], [1], [0, 0, 1, 1], [], []>} : vector<256x16xbf16>, vector<16x512xbf16>, vector<256x512xf32> -> vector<256x512xf32>
    %c0_3 = arith.constant 0 : index
    %c0_4 = arith.constant 0 : index
    %3 = vector.load %arg3[%c0_3, %c0_4] : memref<256x1xf32, #tpu.memory_space<vmem>>, vector<256x1xf32>
    %4 = vector.broadcast %3 : vector<256x1xf32> to vector<256x512xf32>
    %5 = arith.addf %2, %4 : vector<256x512xf32>
    %cst_5 = arith.constant 0.000000e+00 : f32
    %6 = vector.broadcast %cst_5 : f32 to vector<256x512xf32>
    %7 = arith.maximumf %5, %6 : vector<256x512xf32>
    %8 = arith.truncf %7 : vector<256x512xf32> to vector<256x512xbf16>
    %c0_6 = arith.constant 0 : index
    %c0_7 = arith.constant 0 : index
    %9 = vector.load %arg4[%c0_6, %c0_7] : memref<256x256xbf16, #tpu.memory_space<vmem>>, vector<256x256xbf16>
    %cst_8 = arith.constant dense<0.000000e+00> : vector<256x512xf32>
    %10 = tpu.matmul %9, %8, %cst_8 {dimension_numbers = #tpu.dot_dimension_numbers<[1], [0], [0], [1], [0, 0, 1, 1], [], []>} : vector<256x256xbf16>, vector<256x512xbf16>, vector<256x512xf32> -> vector<256x512xf32>
    %c0_9 = arith.constant 0 : index
    %c0_10 = arith.constant 0 : index
    %11 = vector.load %arg5[%c0_9, %c0_10] : memref<256x1xf32, #tpu.memory_space<vmem>>, vector<256x1xf32>
    %12 = vector.broadcast %11 : vector<256x1xf32> to vector<256x512xf32>
    %13 = arith.addf %10, %12 : vector<256x512xf32>
    %cst_11 = arith.constant 0.000000e+00 : f32
    %14 = vector.broadcast %cst_11 : f32 to vector<256x512xf32>
    %15 = arith.maximumf %13, %14 : vector<256x512xf32>
    %16 = arith.truncf %15 : vector<256x512xf32> to vector<256x512xbf16>
    %c0_12 = arith.constant 0 : index
    %c0_13 = arith.constant 0 : index
    %17 = vector.load %arg6[%c0_12, %c0_13] : memref<8x256xbf16, #tpu.memory_space<vmem>>, vector<8x256xbf16>
    %cst_14 = arith.constant dense<0.000000e+00> : vector<8x512xf32>
    %18 = tpu.matmul %17, %16, %cst_14 {dimension_numbers = #tpu.dot_dimension_numbers<[1], [0], [0], [1], [0, 0, 1, 1], [], []>} : vector<8x256xbf16>, vector<256x512xbf16>, vector<8x512xf32> -> vector<8x512xf32>
    %c0_15 = arith.constant 0 : index
    %c0_16 = arith.constant 0 : index
    %19 = vector.load %arg7[%c0_15, %c0_16] : memref<8x1xf32, #tpu.memory_space<vmem>>, vector<8x1xf32>
    %20 = vector.broadcast %19 : vector<8x1xf32> to vector<8x512xf32>
    %21 = arith.addf %18, %20 : vector<8x512xf32>
    %c0_17 = arith.constant 0 : index
    %c0_18 = arith.constant 0 : index
    %22 = vector.load %arg8[%c0_17, %c0_18] : memref<8x512xf32, #tpu.memory_space<vmem>>, vector<8x512xf32>
    tpu.vector_store %arg8[%c0_17, %c0_18], %21 {strides = array<i32>} : memref<8x512xf32, #tpu.memory_space<vmem>>, vector<8x512xf32>,
    return
  }
  func.func @transform_0(%arg0: i32) -> (i32, i32) {
    %c0_i32 = arith.constant 0 : i32
    %c0_i32_0 = arith.constant 0 : i32
    return %c0_i32, %arg0 : i32, i32
  }
  func.func @transform_1(%arg0: i32) -> (i32, i32) {
    %c0_i32 = arith.constant 0 : i32
    %c0_i32_0 = arith.constant 0 : i32
    %c0_i32_1 = arith.constant 0 : i32
    return %c0_i32, %c0_i32_0 : i32, i32
  }
  func.func @transform_2(%arg0: i32) -> (i32, i32) {
    %c0_i32 = arith.constant 0 : i32
    %c0_i32_0 = arith.constant 0 : i32
    %c0_i32_1 = arith.constant 0 : i32
    return %c0_i32, %c0_i32_0 : i32, i32
  }
  func.func @transform_3(%arg0: i32) -> (i32, i32) {
    %c0_i32 = arith.constant 0 : i32
    %c0_i32_0 = arith.constant 0 : i32
    %c0_i32_1 = arith.constant 0 : i32
    return %c0_i32, %c0_i32_0 : i32, i32
  }
  func.func @transform_4(%arg0: i32) -> (i32, i32) {
    %c0_i32 = arith.constant 0 : i32
    %c0_i32_0 = arith.constant 0 : i32
    %c0_i32_1 = arith.constant 0 : i32
    return %c0_i32, %c0_i32_0 : i32, i32
  }
  func.func @transform_5(%arg0: i32) -> (i32, i32) {
    %c0_i32 = arith.constant 0 : i32
    %c0_i32_0 = arith.constant 0 : i32
    %c0_i32_1 = arith.constant 0 : i32
    return %c0_i32, %c0_i32_0 : i32, i32
  }
  func.func @transform_6(%arg0: i32) -> (i32, i32) {
    %c0_i32 = arith.constant 0 : i32
    %c0_i32_0 = arith.constant 0 : i32
    %c0_i32_1 = arith.constant 0 : i32
    return %c0_i32, %c0_i32_0 : i32, i32
  }
  func.func @transform_7(%arg0: i32) -> (i32, i32) {
    %c0_i32 = arith.constant 0 : i32
    %c0_i32_0 = arith.constant 0 : i32
    return %c0_i32, %arg0 : i32, i32
  }
}

</mosaic_0001>

<llo_original>
// kernel: policy_net_forward.1
$region0: #{policy_net_forward.1}
  #allocation0 [shape = 'u32[]', space=smem, size = 0x4, offset = 0x4, fixed_abs, tag = 'smem constant byte address 0x4 - core index']
  #allocation1 [shape = 'u32[72,128]{1,0:T(1,128)}', space=vmem, size = 0x9000, scoped, tag = 'internal scratch']
  %s0 = inlined_call_operand.vmem [shape: bf16[16,512], index: 0, kind: input, shape index: {}]
  %s1 = inlined_call_operand.vmem [shape: bf16[256,16], index: 1, kind: input, shape index: {}]
  %s2 = inlined_call_operand.vmem [shape: f32[256,1], index: 2, kind: input, shape index: {}]
  %s3 = inlined_call_operand.vmem [shape: bf16[256,256], index: 3, kind: input, shape index: {}]
  %s4 = inlined_call_operand.vmem [shape: f32[256,1], index: 4, kind: input, shape index: {}]
  %s5 = inlined_call_operand.vmem [shape: bf16[8,256], index: 5, kind: input, shape index: {}]
  %s6 = inlined_call_operand.vmem [shape: f32[8,1], index: 6, kind: input, shape index: {}]
  %s7 = inlined_call_operand.vmem [shape: f32[8,512], index: 7, kind: output, shape index: {}]
  %s8 = sld [smem:[#allocation0]]
  $region38: #{policy_net_forward.1} parent=0
    _
  %s10 = ssub.s32 1, %s8
  %s11 = scalar_select 0, %s10, %s8
  // Predicated region
  $region2: #{policy_net_forward.1} parent=0 // pred_check
    _
  $region3: #{policy_net_forward.1} parent=0 // pred_check_branch
    %13 = sbr.rel (0) target = $region5
  $region4: #{policy_net_forward.1} parent=0 // pred_region
    _
  $region5: #{policy_net_forward.1} parent=0 // pred_fallthru
    _
  // Predicated region
  $region6: #{policy_net_forward.1} parent=0 // pred_check
    _
  $region7: #{policy_net_forward.1} parent=0 // pred_check_branch
    %15 = sbr.rel (0) target = $region9
  $region8: #{policy_net_forward.1} parent=0 // pred_region
    _
  $region9: #{policy_net_forward.1} parent=0 // pred_fallthru
    _
  // Predicated region
  $region10: #{policy_net_forward.1} parent=0 // pred_check
    _
  $region11: #{policy_net_forward.1} parent=0 // pred_check_branch
    %17 = sbr.rel (0) target = $region13
  $region12: #{policy_net_forward.1} parent=0 // pred_region
    _
  $region13: #{policy_net_forward.1} parent=0 // pred_fallthru
    _
  // Predicated region
  $region14: #{policy_net_forward.1} parent=0 // pred_check
    _
  $region15: #{policy_net_forward.1} parent=0 // pred_check_branch
    %19 = sbr.rel (0) target = $region17
  $region16: #{policy_net_forward.1} parent=0 // pred_region
    _
  $region17: #{policy_net_forward.1} parent=0 // pred_fallthru
    _
  // Predicated region
  $region18: #{policy_net_forward.1} parent=0 // pred_check
    _
  $region19: #{policy_net_forward.1} parent=0 // pred_check_branch
    %21 = sbr.rel (0) target = $region21
  $region20: #{policy_net_forward.1} parent=0 // pred_region
    _
  $region21: #{policy_net_forward.1} parent=0 // pred_fallthru
    _
  // Predicated region
  $region22: #{policy_net_forward.1} parent=0 // pred_check
    _
  $region23: #{policy_net_forward.1} parent=0 // pred_check_branch
    %23 = sbr.rel (0) target = $region25
  $region24: #{policy_net_forward.1} parent=0 // pred_region
    _
  $region25: #{policy_net_forward.1} parent=0 // pred_fallthru
    _
  // Predicated region
  $region26: #{policy_net_forward.1} parent=0 // pred_check
    _
  $region27: #{policy_net_forward.1} parent=0 // pred_check_branch
    %25 = sbr.rel (0) target = $region29
  $region28: #{policy_net_forward.1} parent=0 // pred_region
    _
  $region29: #{policy_net_forward.1} parent=0 // pred_fallthru
    _
  %v27 = vld [vmem:[%s0] sm:$0xff]
  %v28 = vld [vmem:[%s0 + $0x8] sm:$0xff]
  %v29 = vld [vmem:[%s0 + $0x10] sm:$0xff]
  %v30 = vld [vmem:[%s0 + $0x18] sm:$0xff]
  %v31 = vld [vmem:[%s1] sm:$0xf]
  %v32 = vld [vmem:[%s1 + $0x4] sm:$0xf]
  %v33 = vld [vmem:[%s1 + $0x8] sm:$0xf]
  %v34 = vld [vmem:[%s1 + $0xc] sm:$0xf]
  %v35 = vld [vmem:[%s1 + $0x10] sm:$0xf]
  %v36 = vld [vmem:[%s1 + $0x14] sm:$0xf]
  %v37 = vld [vmem:[%s1 + $0x18] sm:$0xf]
  %v38 = vld [vmem:[%s1 + $0x1c] sm:$0xf]
  %v39 = vld [vmem:[%s1 + $0x20] sm:$0xf]
  %v40 = vld [vmem:[%s1 + $0x24] sm:$0xf]
  %v41 = vld [vmem:[%s1 + $0x28] sm:$0xf]
  %v42 = vld [vmem:[%s1 + $0x2c] sm:$0xf]
  %v43 = vld [vmem:[%s1 + $0x30] sm:$0xf]
  %v44 = vld [vmem:[%s1 + $0x34] sm:$0xf]
  %v45 = vld [vmem:[%s1 + $0x38] sm:$0xf]
  %v46 = vld [vmem:[%s1 + $0x3c] sm:$0xf]
  %v47 = vld [vmem:[%s1 + $0x40] sm:$0xf]
  %v48 = vld [vmem:[%s1 + $0x44] sm:$0xf]
  %v49 = vld [vmem:[%s1 + $0x48] sm:$0xf]
  %v50 = vld [vmem:[%s1 + $0x4c] sm:$0xf]
  %v51 = vld [vmem:[%s1 + $0x50] sm:$0xf]
  %v52 = vld [vmem:[%s1 + $0x54] sm:$0xf]
  %v53 = vld [vmem:[%s1 + $0x58] sm:$0xf]
  %v54 = vld [vmem:[%s1 + $0x5c] sm:$0xf]
  %v55 = vld [vmem:[%s1 + $0x60] sm:$0xf]
  %v56 = vld [vmem:[%s1 + $0x64] sm:$0xf]
  %v57 = vld [vmem:[%s1 + $0x68] sm:$0xf]
  %v58 = vld [vmem:[%s1 + $0x6c] sm:$0xf]
  %v59 = vld [vmem:[%s1 + $0x70] sm:$0xf]
  %v60 = vld [vmem:[%s1 + $0x74] sm:$0xf]
  %v61 = vld [vmem:[%s1 + $0x78] sm:$0xf]
  %v62 = vld [vmem:[%s1 + $0x7c] sm:$0xf]
  %v63 = vld [vmem:[%s2] sm:$0xff]
  %v64 = vld [vmem:[%s2 + $0x8] sm:$0xff]
  %v65 = vld [vmem:[%s2 + $0x10] sm:$0xff]
  %v66 = vld [vmem:[%s2 + $0x18] sm:$0xff]
  %v67 = vld [vmem:[%s2 + $0x20] sm:$0xff]
  %v68 = vld [vmem:[%s2 + $0x28] sm:$0xff]
  %v69 = vld [vmem:[%s2 + $0x30] sm:$0xff]
  %v70 = vld [vmem:[%s2 + $0x38] sm:$0xff]
  %v71 = vld [vmem:[%s2 + $0x40] sm:$0xff]
  %v72 = vld [vmem:[%s2 + $0x48] sm:$0xff]
  %v73 = vld [vmem:[%s2 + $0x50] sm:$0xff]
  %v74 = vld [vmem:[%s2 + $0x58] sm:$0xff]
  %v75 = vld [vmem:[%s2 + $0x60] sm:$0xff]
  %v76 = vld [vmem:[%s2 + $0x68] sm:$0xff]
  %v77 = vld [vmem:[%s2 + $0x70] sm:$0xff]
  %v78 = vld [vmem:[%s2 + $0x78] sm:$0xff]
  %v79 = vld [vmem:[%s2 + $0x80] sm:$0xff]
  %v80 = vld [vmem:[%s2 + $0x88] sm:$0xff]
  %v81 = vld [vmem:[%s2 + $0x90] sm:$0xff]
  %v82 = vld [vmem:[%s2 + $0x98] sm:$0xff]
  %v83 = vld [vmem:[%s2 + $0xa0] sm:$0xff]
  %v84 = vld [vmem:[%s2 + $0xa8] sm:$0xff]
  %v85 = vld [vmem:[%s2 + $0xb0] sm:$0xff]
  %v86 = vld [vmem:[%s2 + $0xb8] sm:$0xff]
  %v87 = vld [vmem:[%s2 + $0xc0] sm:$0xff]
  %v88 = vld [vmem:[%s2 + $0xc8] sm:$0xff]
  %v89 = vld [vmem:[%s2 + $0xd0] sm:$0xff]
  %v90 = vld [vmem:[%s2 + $0xd8] sm:$0xff]
  %v91 = vld [vmem:[%s2 + $0xe0] sm:$0xff]
  %v92 = vld [vmem:[%s2 + $0xe8] sm:$0xff]
  %v93 = vld [vmem:[%s2 + $0xf0] sm:$0xff]
  %v94 = vld [vmem:[%s2 + $0xf8] sm:$0xff]
  %96 = vset.pattern.permute.xlu0 0
  %97 = vperm.xlu0 %96, %v63
  %v98 = vpop.permute.xlu0 %97
  %101 = vset.pattern.permute.xlu0 0
  %102 = vperm.xlu0 %101, %v64
  %v103 = vpop.permute.xlu0 %102
  %106 = vset.pattern.permute.xlu0 0
  %107 = vperm.xlu0 %106, %v65
  %v108 = vpop.permute.xlu0 %107
  %111 = vset.pattern.permute.xlu0 0
  %112 = vperm.xlu0 %111, %v66
  %v113 = vpop.permute.xlu0 %112
  %116 = vset.pattern.permute.xlu0 0
  %117 = vperm.xlu0 %116, %v67
  %v118 = vpop.permute.xlu0 %117
  %121 = vset.pattern.permute.xlu0 0
  %122 = vperm.xlu0 %121, %v68
  %v123 = vpop.permute.xlu0 %122
  %126 = vset.pattern.permute.xlu0 0
  %127 = vperm.xlu0 %126, %v69
  %v128 = vpop.permute.xlu0 %127
  %131 = vset.pattern.permute.xlu0 0
  %132 = vperm.xlu0 %131, %v70
  %v133 = vpop.permute.xlu0 %132
  %136 = vset.pattern.permute.xlu0 0
  %137 = vperm.xlu0 %136, %v71
  %v138 = vpop.permute.xlu0 %137
  %141 = vset.pattern.permute.xlu0 0
  %142 = vperm.xlu0 %141, %v72
  %v143 = vpop.permute.xlu0 %142
  %146 = vset.pattern.permute.xlu0 0
  %147 = vperm.xlu0 %146, %v73
  %v148 = vpop.permute.xlu0 %147
  %151 = vset.pattern.permute.xlu0 0
  %152 = vperm.xlu0 %151, %v74
  %v153 = vpop.permute.xlu0 %152
  %156 = vset.pattern.permute.xlu0 0
  %157 = vperm.xlu0 %156, %v75
  %v158 = vpop.permute.xlu0 %157
  %161 = vset.pattern.permute.xlu0 0
  %162 = vperm.xlu0 %161, %v76
  %v163 = vpop.permute.xlu0 %162
  %166 = vset.pattern.permute.xlu0 0
  %167 = vperm.xlu0 %166, %v77
  %v168 = vpop.permute.xlu0 %167
  %171 = vset.pattern.permute.xlu0 0
  %172 = vperm.xlu0 %171, %v78
  %v173 = vpop.permute.xlu0 %172
  %176 = vset.pattern.permute.xlu0 0
  %177 = vperm.xlu0 %176, %v79
  %v178 = vpop.permute.xlu0 %177
  %181 = vset.pattern.permute.xlu0 0
  %182 = vperm.xlu0 %181, %v80
  %v183 = vpop.permute.xlu0 %182
  %186 = vset.pattern.permute.xlu0 0
  %187 = vperm.xlu0 %186, %v81
  %v188 = vpop.permute.xlu0 %187
  %191 = vset.pattern.permute.xlu0 0
  %192 = vperm.xlu0 %191, %v82
  %v193 = vpop.permute.xlu0 %192
  %196 = vset.pattern.permute.xlu0 0
  %197 = vperm.xlu0 %196, %v83
  %v198 = vpop.permute.xlu0 %197
  %201 = vset.pattern.permute.xlu0 0
  %202 = vperm.xlu0 %201, %v84
  %v203 = vpop.permute.xlu0 %202
  %206 = vset.pattern.permute.xlu0 0
  %207 = vperm.xlu0 %206, %v85
  %v208 = vpop.permute.xlu0 %207
  %211 = vset.pattern.permute.xlu0 0
  %212 = vperm.xlu0 %211, %v86
  %v213 = vpop.permute.xlu0 %212
  %216 = vset.pattern.permute.xlu0 0
  %217 = vperm.xlu0 %216, %v87
  %v218 = vpop.permute.xlu0 %217
  %221 = vset.pattern.permute.xlu0 0
  %222 = vperm.xlu0 %221, %v88
  %v223 = vpop.permute.xlu0 %222
  %226 = vset.pattern.permute.xlu0 0
  %227 = vperm.xlu0 %226, %v89
  %v228 = vpop.permute.xlu0 %227
  %231 = vset.pattern.permute.xlu0 0
  %232 = vperm.xlu0 %231, %v90
  %v233 = vpop.permute.xlu0 %232
  %236 = vset.pattern.permute.xlu0 0
  %237 = vperm.xlu0 %236, %v91
  %v238 = vpop.permute.xlu0 %237
  %241 = vset.pattern.permute.xlu0 0
  %242 = vperm.xlu0 %241, %v92
  %v243 = vpop.permute.xlu0 %242
  %246 = vset.pattern.permute.xlu0 0
  %247 = vperm.xlu0 %246, %v93
  %v248 = vpop.permute.xlu0 %247
  %251 = vset.pattern.permute.xlu0 0
  %252 = vperm.xlu0 %251, %v94
  %v253 = vpop.permute.xlu0 %252
  %v287 = vunpack.c.l.b16 %v31
  %v288 = vunpack.c.l.b16 %v32
  %v289 = vunpack.c.l.b16 %v33
  %v290 = vunpack.c.l.b16 %v34
  %v291 = vunpack.c.l.b16 %v35
  %v292 = vunpack.c.l.b16 %v36
  %v293 = vunpack.c.l.b16 %v37
  %v294 = vunpack.c.l.b16 %v38
  %v295 = vunpack.c.l.b16 %v39
  %v296 = vunpack.c.l.b16 %v40
  %v297 = vunpack.c.l.b16 %v41
  %v298 = vunpack.c.l.b16 %v42
  %v299 = vunpack.c.l.b16 %v43
  %v300 = vunpack.c.l.b16 %v44
  %v301 = vunpack.c.l.b16 %v45
  %v302 = vunpack.c.l.b16 %v46
  %v303 = vunpack.c.l.b16 %v47
  %v304 = vunpack.c.l.b16 %v48
  %v305 = vunpack.c.l.b16 %v49
  %v306 = vunpack.c.l.b16 %v50
  %v307 = vunpack.c.l.b16 %v51
  %v308 = vunpack.c.l.b16 %v52
  %v309 = vunpack.c.l.b16 %v53
  %v310 = vunpack.c.l.b16 %v54
  %v311 = vunpack.c.l.b16 %v55
  %v312 = vunpack.c.l.b16 %v56
  %v313 = vunpack.c.l.b16 %v57
  %v314 = vunpack.c.l.b16 %v58
  %v315 = vunpack.c.l.b16 %v59
  %v316 = vunpack.c.l.b16 %v60
  %v317 = vunpack.c.l.b16 %v61
  %v318 = vunpack.c.l.b16 %v62
  %v319 = vpack.c.b16 %v288, %v287
  %v320 = vpack.c.b16 %v290, %v289
  %v321 = vpack.c.b16 %v292, %v291
  %v322 = vpack.c.b16 %v294, %v293
  %v323 = vpack.c.b16 %v296, %v295
  %v324 = vpack.c.b16 %v298, %v297
  %v325 = vpack.c.b16 %v300, %v299
  %v326 = vpack.c.b16 %v302, %v301
  %v327 = vpack.c.b16 %v304, %v303
  %v328 = vpack.c.b16 %v306, %v305
  %v329 = vpack.c.b16 %v308, %v307
  %v330 = vpack.c.b16 %v310, %v309
  %v331 = vpack.c.b16 %v312, %v311
  %v332 = vpack.c.b16 %v314, %v313
  %v333 = vpack.c.b16 %v316, %v315
  %v334 = vpack.c.b16 %v318, %v317
  %v339 = vunpack.c.l.b16 %v27
  %v340 = vunpack.c.h.b16 %v27
  %v341 = vunpack.c.l.b16 %v28
  %v342 = vunpack.c.h.b16 %v28
  %v343 = vunpack.c.l.b16 %v29
  %v344 = vunpack.c.h.b16 %v29
  %v345 = vunpack.c.l.b16 %v30
  %v346 = vunpack.c.h.b16 %v30
  %v347 = vpack.c.b16 %v343, %v339
  %v348 = vpack.c.b16 %v344, %v340
  %v349 = vpack.c.b16 %v345, %v341
  %v350 = vpack.c.b16 %v346, %v342
  %vm355 = vcmask 130048
  %v357 = vsel %vm355, %v319, 0
  %v360 = vsel %vm355, %v320, 0
  %v363 = vsel %vm355, %v321, 0
  %v366 = vsel %vm355, %v322, 0
  %v369 = vsel %vm355, %v323, 0
  %v372 = vsel %vm355, %v324, 0
  %v375 = vsel %vm355, %v325, 0
  %v378 = vsel %vm355, %v326, 0
  %v381 = vsel %vm355, %v327, 0
  %v384 = vsel %vm355, %v328, 0
  %v387 = vsel %vm355, %v329, 0
  %v390 = vsel %vm355, %v330, 0
  %v393 = vsel %vm355, %v331, 0
  %v396 = vsel %vm355, %v332, 0
  %v399 = vsel %vm355, %v333, 0
  %v402 = vsel %vm355, %v334, 0
  %404 = vmatpush.bf16.msra.mxu0 0
  %405 = vmatpush.bf16.msra.mxu0 0
  %406 = vmatpush.bf16.msra.mxu0 0
  %407 = vmatpush.bf16.msra.mxu0 0
  %408 = vmatpush.bf16.msra.mxu0 0
  %409 = vmatpush.bf16.msra.mxu0 0
  %410 = vmatpush.bf16.msra.mxu0 0
  %411 = vmatpush.bf16.msra.mxu0 %v347
  %412 = vmatmul.bf16.gmra.mxu0 %v357
  %v413 = vpop.f32.mrf.mxu0
  %v414 = vadd.f32 %v98, %v413
  %v415 = vpop.f32.mrf.mxu0
  %v416 = vadd.f32 %v103, %v415
  %417 = vmatmul.bf16.gmra.mxu0 %v360
  %v418 = vpop.f32.mrf.mxu0
  %v419 = vadd.f32 %v108, %v418
  %v420 = vpop.f32.mrf.mxu0
  %v421 = vadd.f32 %v113, %v420
  %422 = vmatmul.bf16.gmra.mxu0 %v363
  %v423 = vpop.f32.mrf.mxu0
  %v424 = vadd.f32 %v118, %v423
  %v425 = vpop.f32.mrf.mxu0
  %v426 = vadd.f32 %v123, %v425
  %427 = vmatmul.bf16.gmra.mxu0 %v366
  %v428 = vpop.f32.mrf.mxu0
  %v429 = vadd.f32 %v128, %v428
  %v430 = vpop.f32.mrf.mxu0
  %v431 = vadd.f32 %v133, %v430
  %432 = vmatmul.bf16.gmra.mxu0 %v369
  %v433 = vpop.f32.mrf.mxu0
  %v434 = vadd.f32 %v138, %v433
  %v435 = vpop.f32.mrf.mxu0
  %v436 = vadd.f32 %v143, %v435
  %437 = vmatmul.bf16.gmra.mxu0 %v372
  %v438 = vpop.f32.mrf.mxu0
  %v439 = vadd.f32 %v148, %v438
  %v440 = vpop.f32.mrf.mxu0
  %v441 = vadd.f32 %v153, %v440
  %442 = vmatmul.bf16.gmra.mxu0 %v375
  %v443 = vpop.f32.mrf.mxu0
  %v444 = vadd.f32 %v158, %v443
  %v445 = vpop.f32.mrf.mxu0
  %v446 = vadd.f32 %v163, %v445
  %447 = vmatmul.bf16.gmra.mxu0 %v378
  %v448 = vpop.f32.mrf.mxu0
  %v449 = vadd.f32 %v168, %v448
  %v450 = vpop.f32.mrf.mxu0
  %v451 = vadd.f32 %v173, %v450
  %452 = vmatmul.bf16.gmra.mxu0 %v381
  %v453 = vpop.f32.mrf.mxu0
  %v454 = vadd.f32 %v178, %v453
  %v455 = vpop.f32.mrf.mxu0
  %v456 = vadd.f32 %v183, %v455
  %457 = vmatmul.bf16.gmra.mxu0 %v384
  %v458 = vpop.f32.mrf.mxu0
  %v459 = vadd.f32 %v188, %v458
  %v460 = vpop.f32.mrf.mxu0
  %v461 = vadd.f32 %v193, %v460
  %462 = vmatmul.bf16.gmra.mxu0 %v387
  %v463 = vpop.f32.mrf.mxu0
  %v464 = vadd.f32 %v198, %v463
  %v465 = vpop.f32.mrf.mxu0
  %v466 = vadd.f32 %v203, %v465
  %467 = vmatmul.bf16.gmra.mxu0 %v390
  %v468 = vpop.f32.mrf.mxu0
  %v469 = vadd.f32 %v208, %v468
  %v470 = vpop.f32.mrf.mxu0
  %v471 = vadd.f32 %v213, %v470
  %472 = vmatmul.bf16.gmra.mxu0 %v393
  %v473 = vpop.f32.mrf.mxu0
  %v474 = vadd.f32 %v218, %v473
  %v475 = vpop.f32.mrf.mxu0
  %v476 = vadd.f32 %v223, %v475
  %477 = vmatmul.bf16.gmra.mxu0 %v396
  %v478 = vpop.f32.mrf.mxu0
  %v479 = vadd.f32 %v228, %v478
  %v480 = vpop.f32.mrf.mxu0
  %v481 = vadd.f32 %v233, %v480
  %482 = vmatmul.bf16.gmra.mxu0 %v399
  %v483 = vpop.f32.mrf.mxu0
  %v484 = vadd.f32 %v238, %v483
  %v485 = vpop.f32.mrf.mxu0
  %v486 = vadd.f32 %v243, %v485
  %487 = vmatmul.bf16.gmra.mxu0 %v402
  %v488 = vpop.f32.mrf.mxu0
  %v489 = vadd.f32 %v248, %v488
  %v490 = vpop.f32.mrf.mxu0
  %v491 = vadd.f32 %v253, %v490
  %492 = vdwg.mxu0
  %493 = vmatpush.bf16.msra.mxu0 0
  %494 = vmatpush.bf16.msra.mxu0 0
  %495 = vmatpush.bf16.msra.mxu0 0
  %496 = vmatpush.bf16.msra.mxu0 0
  %497 = vmatpush.bf16.msra.mxu0 0
  %498 = vmatpush.bf16.msra.mxu0 0
  %499 = vmatpush.bf16.msra.mxu0 0
  %500 = vmatpush.bf16.msra.mxu0 %v348
  %501 = vmatmul.bf16.gmra.mxu0 %v357
  %v502 = vpop.f32.mrf.mxu0
  %v503 = vadd.f32 %v98, %v502
  %v504 = vpop.f32.mrf.mxu0
  %v505 = vadd.f32 %v103, %v504
  %506 = vmatmul.bf16.gmra.mxu0 %v360
  %v507 = vpop.f32.mrf.mxu0
  %v508 = vadd.f32 %v108, %v507
  %v509 = vpop.f32.mrf.mxu0
  %v510 = vadd.f32 %v113, %v509
  %511 = vmatmul.bf16.gmra.mxu0 %v363
  %v512 = vpop.f32.mrf.mxu0
  %v513 = vadd.f32 %v118, %v512
  %v514 = vpop.f32.mrf.mxu0
  %v515 = vadd.f32 %v123, %v514
  %516 = vmatmul.bf16.gmra.mxu0 %v366
  %v517 = vpop.f32.mrf.mxu0
  %v518 = vadd.f32 %v128, %v517
  %v519 = vpop.f32.mrf.mxu0
  %v520 = vadd.f32 %v133, %v519
  %521 = vmatmul.bf16.gmra.mxu0 %v369
  %v522 = vpop.f32.mrf.mxu0
  %v523 = vadd.f32 %v138, %v522
  %v524 = vpop.f32.mrf.mxu0
  %v525 = vadd.f32 %v143, %v524
  %526 = vmatmul.bf16.gmra.mxu0 %v372
  %v527 = vpop.f32.mrf.mxu0
  %v528 = vadd.f32 %v148, %v527
  %v529 = vpop.f32.mrf.mxu0
  %v530 = vadd.f32 %v153, %v529
  %531 = vmatmul.bf16.gmra.mxu0 %v375
  %v532 = vpop.f32.mrf.mxu0
  %v533 = vadd.f32 %v158, %v532
  %v534 = vpop.f32.mrf.mxu0
  %v535 = vadd.f32 %v163, %v534
  %536 = vmatmul.bf16.gmra.mxu0 %v378
  %v537 = vpop.f32.mrf.mxu0
  %v538 = vadd.f32 %v168, %v537
  %v539 = vpop.f32.mrf.mxu0
  %v540 = vadd.f32 %v173, %v539
  %541 = vmatmul.bf16.gmra.mxu0 %v381
  %v542 = vpop.f32.mrf.mxu0
  %v543 = vadd.f32 %v178, %v542
  %v544 = vpop.f32.mrf.mxu0
  %v545 = vadd.f32 %v183, %v544
  %546 = vmatmul.bf16.gmra.mxu0 %v384
  %v547 = vpop.f32.mrf.mxu0
  %v548 = vadd.f32 %v188, %v547
  %v549 = vpop.f32.mrf.mxu0
  %v550 = vadd.f32 %v193, %v549
  %551 = vmatmul.bf16.gmra.mxu0 %v387
  %v552 = vpop.f32.mrf.mxu0
  %v553 = vadd.f32 %v198, %v552
  %v554 = vpop.f32.mrf.mxu0
  %v555 = vadd.f32 %v203, %v554
  %556 = vmatmul.bf16.gmra.mxu0 %v390
  %v557 = vpop.f32.mrf.mxu0
  %v558 = vadd.f32 %v208, %v557
  %v559 = vpop.f32.mrf.mxu0
  %v560 = vadd.f32 %v213, %v559
  %561 = vmatmul.bf16.gmra.mxu0 %v393
  %v562 = vpop.f32.mrf.mxu0
  %v563 = vadd.f32 %v218, %v562
  %v564 = vpop.f32.mrf.mxu0
  %v565 = vadd.f32 %v223, %v564
  %566 = vmatmul.bf16.gmra.mxu0 %v396
  %v567 = vpop.f32.mrf.mxu0
  %v568 = vadd.f32 %v228, %v567
  %v569 = vpop.f32.mrf.mxu0
  %v570 = vadd.f32 %v233, %v569
  %571 = vmatmul.bf16.gmra.mxu0 %v399
  %v572 = vpop.f32.mrf.mxu0
  %v573 = vadd.f32 %v238, %v572
  %v574 = vpop.f32.mrf.mxu0
  %v575 = vadd.f32 %v243, %v574
  %576 = vmatmul.bf16.gmra.mxu0 %v402
  %v577 = vpop.f32.mrf.mxu0
  %v578 = vadd.f32 %v248, %v577
  %v579 = vpop.f32.mrf.mxu0
  %v580 = vadd.f32 %v253, %v579
  %581 = vdwg.mxu0
  %582 = vmatpush.bf16.msra.mxu0 0
  %583 = vmatpush.bf16.msra.mxu0 0
  %584 = vmatpush.bf16.msra.mxu0 0
  %585 = vmatpush.bf16.msra.mxu0 0
  %586 = vmatpush.bf16.msra.mxu0 0
  %587 = vmatpush.bf16.msra.mxu0 0
  %588 = vmatpush.bf16.msra.mxu0 0
  %589 = vmatpush.bf16.msra.mxu0 %v349
  %590 = vmatmul.bf16.gmra.mxu0 %v357
  %v591 = vpop.f32.mrf.mxu0
  %v592 = vadd.f32 %v98, %v591
  %v593 = vpop.f32.mrf.mxu0
  %v594 = vadd.f32 %v103, %v593
  %595 = vmatmul.bf16.gmra.mxu0 %v360
  %v596 = vpop.f32.mrf.mxu0
  %v597 = vadd.f32 %v108, %v596
  %v598 = vpop.f32.mrf.mxu0
  %v599 = vadd.f32 %v113, %v598
  %600 = vmatmul.bf16.gmra.mxu0 %v363
  %v601 = vpop.f32.mrf.mxu0
  %v602 = vadd.f32 %v118, %v601
  %v603 = vpop.f32.mrf.mxu0
  %v604 = vadd.f32 %v123, %v603
  %605 = vmatmul.bf16.gmra.mxu0 %v366
  %v606 = vpop.f32.mrf.mxu0
  %v607 = vadd.f32 %v128, %v606
  %v608 = vpop.f32.mrf.mxu0
  %v609 = vadd.f32 %v133, %v608
  %610 = vmatmul.bf16.gmra.mxu0 %v369
  %v611 = vpop.f32.mrf.mxu0
  %v612 = vadd.f32 %v138, %v611
  %v613 = vpop.f32.mrf.mxu0
  %v614 = vadd.f32 %v143, %v613
  %615 = vmatmul.bf16.gmra.mxu0 %v372
  %v616 = vpop.f32.mrf.mxu0
  %v617 = vadd.f32 %v148, %v616
  %v618 = vpop.f32.mrf.mxu0
  %v619 = vadd.f32 %v153, %v618
  %620 = vmatmul.bf16.gmra.mxu0 %v375
  %v621 = vpop.f32.mrf.mxu0
  %v622 = vadd.f32 %v158, %v621
  %v623 = vpop.f32.mrf.mxu0
  %v624 = vadd.f32 %v163, %v623
  %625 = vmatmul.bf16.gmra.mxu0 %v378
  %v626 = vpop.f32.mrf.mxu0
  %v627 = vadd.f32 %v168, %v626
  %v628 = vpop.f32.mrf.mxu0
  %v629 = vadd.f32 %v173, %v628
  %630 = vmatmul.bf16.gmra.mxu0 %v381
  %v631 = vpop.f32.mrf.mxu0
  %v632 = vadd.f32 %v178, %v631
  %v633 = vpop.f32.mrf.mxu0
  %v634 = vadd.f32 %v183, %v633
  %635 = vmatmul.bf16.gmra.mxu0 %v384
  %v636 = vpop.f32.mrf.mxu0
  %v637 = vadd.f32 %v188, %v636
  %v638 = vpop.f32.mrf.mxu0
  %v639 = vadd.f32 %v193, %v638
  %640 = vmatmul.bf16.gmra.mxu0 %v387
  %v641 = vpop.f32.mrf.mxu0
  %v642 = vadd.f32 %v198, %v641
  %v643 = vpop.f32.mrf.mxu0
  %v644 = vadd.f32 %v203, %v643
  %645 = vmatmul.bf16.gmra.mxu0 %v390
  %v646 = vpop.f32.mrf.mxu0
  %v647 = vadd.f32 %v208, %v646
  %v648 = vpop.f32.mrf.mxu0
  %v649 = vadd.f32 %v213, %v648
  %650 = vmatmul.bf16.gmra.mxu0 %v393
  %v651 = vpop.f32.mrf.mxu0
  %v652 = vadd.f32 %v218, %v651
  %v653 = vpop.f32.mrf.mxu0
  %v654 = vadd.f32 %v223, %v653
  %655 = vmatmul.bf16.gmra.mxu0 %v396
  %v656 = vpop.f32.mrf.mxu0
  %v657 = vadd.f32 %v228, %v656
  %v658 = vpop.f32.mrf.mxu0
  %v659 = vadd.f32 %v233, %v658
  %660 = vmatmul.bf16.gmra.mxu0 %v399
  %v661 = vpop.f32.mrf.mxu0
  %v662 = vadd.f32 %v238, %v661
  %v663 = vpop.f32.mrf.mxu0
  %v664 = vadd.f32 %v243, %v663
  %665 = vmatmul.bf16.gmra.mxu0 %v402
  %v666 = vpop.f32.mrf.mxu0
  %v667 = vadd.f32 %v248, %v666
  %v668 = vpop.f32.mrf.mxu0
  %v669 = vadd.f32 %v253, %v668
  %670 = vdwg.mxu0
  %671 = vmatpush.bf16.msra.mxu0 0
  %672 = vmatpush.bf16.msra.mxu0 0
  %673 = vmatpush.bf16.msra.mxu0 0
  %674 = vmatpush.bf16.msra.mxu0 0
  %675 = vmatpush.bf16.msra.mxu0 0
  %676 = vmatpush.bf16.msra.mxu0 0
  %677 = vmatpush.bf16.msra.mxu0 0
  %678 = vmatpush.bf16.msra.mxu0 %v350
  %679 = vmatmul.bf16.gmra.mxu0 %v357
  %v680 = vpop.f32.mrf.mxu0
  %v681 = vadd.f32 %v98, %v680
  %v682 = vpop.f32.mrf.mxu0
  %v683 = vadd.f32 %v103, %v682
  %684 = vmatmul.bf16.gmra.mxu0 %v360
  %v685 = vpop.f32.mrf.mxu0
  %v686 = vadd.f32 %v108, %v685
  %v687 = vpop.f32.mrf.mxu0
  %v688 = vadd.f32 %v113, %v687
  %689 = vmatmul.bf16.gmra.mxu0 %v363
  %v690 = vpop.f32.mrf.mxu0
  %v691 = vadd.f32 %v118, %v690
  %v692 = vpop.f32.mrf.mxu0
  %v693 = vadd.f32 %v123, %v692
  %694 = vmatmul.bf16.gmra.mxu0 %v366
  %v695 = vpop.f32.mrf.mxu0
  %v696 = vadd.f32 %v128, %v695
  %v697 = vpop.f32.mrf.mxu0
  %v698 = vadd.f32 %v133, %v697
  %699 = vmatmul.bf16.gmra.mxu0 %v369
  %v700 = vpop.f32.mrf.mxu0
  %v701 = vadd.f32 %v138, %v700
  %v702 = vpop.f32.mrf.mxu0
  %v703 = vadd.f32 %v143, %v702
  %704 = vmatmul.bf16.gmra.mxu0 %v372
  %v705 = vpop.f32.mrf.mxu0
  %v706 = vadd.f32 %v148, %v705
  %v707 = vpop.f32.mrf.mxu0
  %v708 = vadd.f32 %v153, %v707
  %709 = vmatmul.bf16.gmra.mxu0 %v375
  %v710 = vpop.f32.mrf.mxu0
  %v711 = vadd.f32 %v158, %v710
  %v712 = vpop.f32.mrf.mxu0
  %v713 = vadd.f32 %v163, %v712
  %714 = vmatmul.bf16.gmra.mxu0 %v378
  %v715 = vpop.f32.mrf.mxu0
  %v716 = vadd.f32 %v168, %v715
  %v717 = vpop.f32.mrf.mxu0
  %v718 = vadd.f32 %v173, %v717
  %719 = vmatmul.bf16.gmra.mxu0 %v381
  %v720 = vpop.f32.mrf.mxu0
  %v721 = vadd.f32 %v178, %v720
  %v722 = vpop.f32.mrf.mxu0
  %v723 = vadd.f32 %v183, %v722
  %724 = vmatmul.bf16.gmra.mxu0 %v384
  %v725 = vpop.f32.mrf.mxu0
  %v726 = vadd.f32 %v188, %v725
  %v727 = vpop.f32.mrf.mxu0
  %v728 = vadd.f32 %v193, %v727
  %729 = vmatmul.bf16.gmra.mxu0 %v387
  %v730 = vpop.f32.mrf.mxu0
  %v731 = vadd.f32 %v198, %v730
  %v732 = vpop.f32.mrf.mxu0
  %v733 = vadd.f32 %v203, %v732
  %734 = vmatmul.bf16.gmra.mxu0 %v390
  %v735 = vpop.f32.mrf.mxu0
  %v736 = vadd.f32 %v208, %v735
  %v737 = vpop.f32.mrf.mxu0
  %v738 = vadd.f32 %v213, %v737
  %739 = vmatmul.bf16.gmra.mxu0 %v393
  %v740 = vpop.f32.mrf.mxu0
  %v741 = vadd.f32 %v218, %v740
  %v742 = vpop.f32.mrf.mxu0
  %v743 = vadd.f32 %v223, %v742
  %744 = vmatmul.bf16.gmra.mxu0 %v396
  %v745 = vpop.f32.mrf.mxu0
  %v746 = vadd.f32 %v228, %v745
  %v747 = vpop.f32.mrf.mxu0
  %v748 = vadd.f32 %v233, %v747
  %749 = vmatmul.bf16.gmra.mxu0 %v399
  %v750 = vpop.f32.mrf.mxu0
  %v751 = vadd.f32 %v238, %v750
  %v752 = vpop.f32.mrf.mxu0
  %v753 = vadd.f32 %v243, %v752
  %754 = vmatmul.bf16.gmra.mxu0 %v402
  %v755 = vpop.f32.mrf.mxu0
  %v756 = vadd.f32 %v248, %v755
  %v757 = vpop.f32.mrf.mxu0
  %v758 = vadd.f32 %v253, %v757
  %759 = vdwg.mxu0
  %v760 = vmax.f32 %v414, 0.0
  %v761 = vmax.f32 %v503, 0.0
  %v762 = vmax.f32 %v592, 0.0
  %v763 = vmax.f32 %v681, 0.0
  %v764 = vmax.f32 %v416, 0.0
  %v765 = vmax.f32 %v505, 0.0
  %v766 = vmax.f32 %v594, 0.0
  %v767 = vmax.f32 %v683, 0.0
  %v768 = vmax.f32 %v419, 0.0
  %v769 = vmax.f32 %v508, 0.0
  %v770 = vmax.f32 %v597, 0.0
  %v771 = vmax.f32 %v686, 0.0
  %v772 = vmax.f32 %v421, 0.0
  %v773 = vmax.f32 %v510, 0.0
  %v774 = vmax.f32 %v599, 0.0
  %v775 = vmax.f32 %v688, 0.0
  %v776 = vmax.f32 %v424, 0.0
  %v777 = vmax.f32 %v513, 0.0
  %v778 = vmax.f32 %v602, 0.0
  %v779 = vmax.f32 %v691, 0.0
  %v780 = vmax.f32 %v426, 0.0
  %v781 = vmax.f32 %v515, 0.0
  %v782 = vmax.f32 %v604, 0.0
  %v783 = vmax.f32 %v693, 0.0
  %v784 = vmax.f32 %v429, 0.0
  %v785 = vmax.f32 %v518, 0.0
  %v786 = vmax.f32 %v607, 0.0
  %v787 = vmax.f32 %v696, 0.0
  %v788 = vmax.f32 %v431, 0.0
  %v789 = vmax.f32 %v520, 0.0
  %v790 = vmax.f32 %v609, 0.0
  %v791 = vmax.f32 %v698, 0.0
  %v792 = vmax.f32 %v434, 0.0
  %v793 = vmax.f32 %v523, 0.0
  %v794 = vmax.f32 %v612, 0.0
  %v795 = vmax.f32 %v701, 0.0
  %v796 = vmax.f32 %v436, 0.0
  %v797 = vmax.f32 %v525, 0.0
  %v798 = vmax.f32 %v614, 0.0
  %v799 = vmax.f32 %v703, 0.0
  %v800 = vmax.f32 %v439, 0.0
  %v801 = vmax.f32 %v528, 0.0
  %v802 = vmax.f32 %v617, 0.0
  %v803 = vmax.f32 %v706, 0.0
  %v804 = vmax.f32 %v441, 0.0
  %v805 = vmax.f32 %v530, 0.0
  %v806 = vmax.f32 %v619, 0.0
  %v807 = vmax.f32 %v708, 0.0
  %v808 = vmax.f32 %v444, 0.0
  %v809 = vmax.f32 %v533, 0.0
  %v810 = vmax.f32 %v622, 0.0
  %v811 = vmax.f32 %v711, 0.0
  %v812 = vmax.f32 %v446, 0.0
  %v813 = vmax.f32 %v535, 0.0
  %v814 = vmax.f32 %v624, 0.0
  %v815 = vmax.f32 %v713, 0.0
  %v816 = vmax.f32 %v449, 0.0
  %v817 = vmax.f32 %v538, 0.0
  %v818 = vmax.f32 %v627, 0.0
  %v819 = vmax.f32 %v716, 0.0
  %v820 = vmax.f32 %v451, 0.0
  %v821 = vmax.f32 %v540, 0.0
  %v822 = vmax.f32 %v629, 0.0
  %v823 = vmax.f32 %v718, 0.0
  %v824 = vmax.f32 %v454, 0.0
  %v825 = vmax.f32 %v543, 0.0
  %v826 = vmax.f32 %v632, 0.0
  %v827 = vmax.f32 %v721, 0.0
  %v828 = vmax.f32 %v456, 0.0
  %v829 = vmax.f32 %v545, 0.0
  %v830 = vmax.f32 %v634, 0.0
  %v831 = vmax.f32 %v723, 0.0
  %v832 = vmax.f32 %v459, 0.0
  %v833 = vmax.f32 %v548, 0.0
  %v834 = vmax.f32 %v637, 0.0
  %v835 = vmax.f32 %v726, 0.0
  %v836 = vmax.f32 %v461, 0.0
  %v837 = vmax.f32 %v550, 0.0
  %v838 = vmax.f32 %v639, 0.0
  %v839 = vmax.f32 %v728, 0.0
  %v840 = vmax.f32 %v464, 0.0
  %v841 = vmax.f32 %v553, 0.0
  %v842 = vmax.f32 %v642, 0.0
  %v843 = vmax.f32 %v731, 0.0
  %v844 = vmax.f32 %v466, 0.0
  %v845 = vmax.f32 %v555, 0.0
  %v846 = vmax.f32 %v644, 0.0
  %v847 = vmax.f32 %v733, 0.0
  %v848 = vmax.f32 %v469, 0.0
  %v849 = vmax.f32 %v558, 0.0
  %v850 = vmax.f32 %v647, 0.0
  %v851 = vmax.f32 %v736, 0.0
  %v852 = vmax.f32 %v471, 0.0
  %v853 = vmax.f32 %v560, 0.0
  %v854 = vmax.f32 %v649, 0.0
  %v855 = vmax.f32 %v738, 0.0
  %v856 = vmax.f32 %v474, 0.0
  %v857 = vmax.f32 %v563, 0.0
  %v858 = vmax.f32 %v652, 0.0
  %v859 = vmax.f32 %v741, 0.0
  %v860 = vmax.f32 %v476, 0.0
  %v861 = vmax.f32 %v565, 0.0
  %v862 = vmax.f32 %v654, 0.0
  %v863 = vmax.f32 %v743, 0.0
  %v864 = vmax.f32 %v479, 0.0
  %v865 = vmax.f32 %v568, 0.0
  %v866 = vmax.f32 %v657, 0.0
  %v867 = vmax.f32 %v746, 0.0
  %v868 = vmax.f32 %v481, 0.0
  %v869 = vmax.f32 %v570, 0.0
  %v870 = vmax.f32 %v659, 0.0
  %v871 = vmax.f32 %v748, 0.0
  %v872 = vmax.f32 %v484, 0.0
  %v873 = vmax.f32 %v573, 0.0
  %v874 = vmax.f32 %v662, 0.0
  %v875 = vmax.f32 %v751, 0.0
  %v876 = vmax.f32 %v486, 0.0
  %v877 = vmax.f32 %v575, 0.0
  %v878 = vmax.f32 %v664, 0.0
  %v879 = vmax.f32 %v753, 0.0
  %v880 = vmax.f32 %v489, 0.0
  %v881 = vmax.f32 %v578, 0.0
  %v882 = vmax.f32 %v667, 0.0
  %v883 = vmax.f32 %v756, 0.0
  %v884 = vmax.f32 %v491, 0.0
  %v885 = vmax.f32 %v580, 0.0
  %v886 = vmax.f32 %v669, 0.0
  %v887 = vmax.f32 %v758, 0.0
  %v888 = vpack.c.bf16 %v764, %v760
  %v889 = vpack.c.bf16 %v765, %v761
  %v890 = vpack.c.bf16 %v766, %v762
  %v891 = vpack.c.bf16 %v767, %v763
  %v892 = vpack.c.bf16 %v772, %v768
  %v893 = vpack.c.bf16 %v773, %v769
  %v894 = vpack.c.bf16 %v774, %v770
  %v895 = vpack.c.bf16 %v775, %v771
  %v896 = vpack.c.bf16 %v780, %v776
  %v897 = vpack.c.bf16 %v781, %v777
  %v898 = vpack.c.bf16 %v782, %v778
  %v899 = vpack.c.bf16 %v783, %v779
  %v900 = vpack.c.bf16 %v788, %v784
  %v901 = vpack.c.bf16 %v789, %v785
  %v902 = vpack.c.bf16 %v790, %v786
  %v903 = vpack.c.bf16 %v791, %v787
  %v904 = vpack.c.bf16 %v796, %v792
  %v905 = vpack.c.bf16 %v797, %v793
  %v906 = vpack.c.bf16 %v798, %v794
  %v907 = vpack.c.bf16 %v799, %v795
  %v908 = vpack.c.bf16 %v804, %v800
  %v909 = vpack.c.bf16 %v805, %v801
  %v910 = vpack.c.bf16 %v806, %v802
  %v911 = vpack.c.bf16 %v807, %v803
  %v912 = vpack.c.bf16 %v812, %v808
  %v913 = vpack.c.bf16 %v813, %v809
  %v914 = vpack.c.bf16 %v814, %v810
  %v915 = vpack.c.bf16 %v815, %v811
  %v916 = vpack.c.bf16 %v820, %v816
  %v917 = vpack.c.bf16 %v821, %v817
  %v918 = vpack.c.bf16 %v822, %v818
  %v919 = vpack.c.bf16 %v823, %v819
  %v920 = vpack.c.bf16 %v828, %v824
  %v921 = vpack.c.bf16 %v829, %v825
  %v922 = vpack.c.bf16 %v830, %v826
  %v923 = vpack.c.bf16 %v831, %v827
  %v924 = vpack.c.bf16 %v836, %v832
  %v925 = vpack.c.bf16 %v837, %v833
  %v926 = vpack.c.bf16 %v838, %v834
  %v927 = vpack.c.bf16 %v839, %v835
  %v928 = vpack.c.bf16 %v844, %v840
  %v929 = vpack.c.bf16 %v845, %v841
  %v930 = vpack.c.bf16 %v846, %v842
  %v931 = vpack.c.bf16 %v847, %v843
  %v932 = vpack.c.bf16 %v852, %v848
  %v933 = vpack.c.bf16 %v853, %v849
  %v934 = vpack.c.bf16 %v854, %v850
  %v935 = vpack.c.bf16 %v855, %v851
  %v936 = vpack.c.bf16 %v860, %v856
  %v937 = vpack.c.bf16 %v861, %v857
  %v938 = vpack.c.bf16 %v862, %v858
  %v939 = vpack.c.bf16 %v863, %v859
  %v940 = vpack.c.bf16 %v868, %v864
  %v941 = vpack.c.bf16 %v869, %v865
  %v942 = vpack.c.bf16 %v870, %v866
  %v943 = vpack.c.bf16 %v871, %v867
  %v944 = vpack.c.bf16 %v876, %v872
  %v945 = vpack.c.bf16 %v877, %v873
  %v946 = vpack.c.bf16 %v878, %v874
  %v947 = vpack.c.bf16 %v879, %v875
  %v948 = vpack.c.bf16 %v884, %v880
  %v949 = vpack.c.bf16 %v885, %v881
  %v950 = vpack.c.bf16 %v886, %v882
  %v951 = vpack.c.bf16 %v887, %v883
  %v952 = vld [vmem:[%s3] sm:$0xff]
  %v953 = vld [vmem:[%s3 + $0x8] sm:$0xff]
  %v954 = vld [vmem:[%s3 + $0x10] sm:$0xff]
  %v955 = vld [vmem:[%s3 + $0x18] sm:$0xff]
  %v956 = vld [vmem:[%s3 + $0x20] sm:$0xff]
  %v957 = vld [vmem:[%s3 + $0x28] sm:$0xff]
  %v958 = vld [vmem:[%s3 + $0x30] sm:$0xff]
  %v959 = vld [vmem:[%s3 + $0x38] sm:$0xff]
  %v960 = vld [vmem:[%s3 + $0x40] sm:$0xff]
  %v961 = vld [vmem:[%s3 + $0x48] sm:$0xff]
  %v962 = vld [vmem:[%s3 + $0x50] sm:$0xff]
  %v963 = vld [vmem:[%s3 + $0x58] sm:$0xff]
  %v964 = vld [vmem:[%s3 + $0x60] sm:$0xff]
  %v965 = vld [vmem:[%s3 + $0x68] sm:$0xff]
  %v966 = vld [vmem:[%s3 + $0x70] sm:$0xff]
  %v967 = vld [vmem:[%s3 + $0x78] sm:$0xff]
  %v968 = vld [vmem:[%s3 + $0x80] sm:$0xff]
  %v969 = vld [vmem:[%s3 + $0x88] sm:$0xff]
  %v970 = vld [vmem:[%s3 + $0x90] sm:$0xff]
  %v971 = vld [vmem:[%s3 + $0x98] sm:$0xff]
  %v972 = vld [vmem:[%s3 + $0xa0] sm:$0xff]
  %v973 = vld [vmem:[%s3 + $0xa8] sm:$0xff]
  %v974 = vld [vmem:[%s3 + $0xb0] sm:$0xff]
  %v975 = vld [vmem:[%s3 + $0xb8] sm:$0xff]
  %v976 = vld [vmem:[%s3 + $0xc0] sm:$0xff]
  %v977 = vld [vmem:[%s3 + $0xc8] sm:$0xff]
  %v978 = vld [vmem:[%s3 + $0xd0] sm:$0xff]
  %v979 = vld [vmem:[%s3 + $0xd8] sm:$0xff]
  %v980 = vld [vmem:[%s3 + $0xe0] sm:$0xff]
  %v981 = vld [vmem:[%s3 + $0xe8] sm:$0xff]
  %v982 = vld [vmem:[%s3 + $0xf0] sm:$0xff]
  %v983 = vld [vmem:[%s3 + $0xf8] sm:$0xff]
  %v984 = vld [vmem:[%s4] sm:$0xff]
  %v985 = vld [vmem:[%s4 + $0x8] sm:$0xff]
  %v986 = vld [vmem:[%s4 + $0x10] sm:$0xff]
  %v987 = vld [vmem:[%s4 + $0x18] sm:$0xff]
  %v988 = vld [vmem:[%s4 + $0x20] sm:$0xff]
  %v989 = vld [vmem:[%s4 + $0x28] sm:$0xff]
  %v990 = vld [vmem:[%s4 + $0x30] sm:$0xff]
  %v991 = vld [vmem:[%s4 + $0x38] sm:$0xff]
  %v992 = vld [vmem:[%s4 + $0x40] sm:$0xff]
  %v993 = vld [vmem:[%s4 + $0x48] sm:$0xff]
  %v994 = vld [vmem:[%s4 + $0x50] sm:$0xff]
  %v995 = vld [vmem:[%s4 + $0x58] sm:$0xff]
  %v996 = vld [vmem:[%s4 + $0x60] sm:$0xff]
  %v997 = vld [vmem:[%s4 + $0x68] sm:$0xff]
  %v998 = vld [vmem:[%s4 + $0x70] sm:$0xff]
  %v999 = vld [vmem:[%s4 + $0x78] sm:$0xff]
  %v1000 = vld [vmem:[%s4 + $0x80] sm:$0xff]
  %v1001 = vld [vmem:[%s4 + $0x88] sm:$0xff]
  %v1002 = vld [vmem:[%s4 + $0x90] sm:$0xff]
  %v1003 = vld [vmem:[%s4 + $0x98] sm:$0xff]
  %v1004 = vld [vmem:[%s4 + $0xa0] sm:$0xff]
  %v1005 = vld [vmem:[%s4 + $0xa8] sm:$0xff]
  %v1006 = vld [vmem:[%s4 + $0xb0] sm:$0xff]
  %v1007 = vld [vmem:[%s4 + $0xb8] sm:$0xff]
  %v1008 = vld [vmem:[%s4 + $0xc0] sm:$0xff]
  %v1009 = vld [vmem:[%s4 + $0xc8] sm:$0xff]
  %v1010 = vld [vmem:[%s4 + $0xd0] sm:$0xff]
  %v1011 = vld [vmem:[%s4 + $0xd8] sm:$0xff]
  %v1012 = vld [vmem:[%s4 + $0xe0] sm:$0xff]
  %v1013 = vld [vmem:[%s4 + $0xe8] sm:$0xff]
  %v1014 = vld [vmem:[%s4 + $0xf0] sm:$0xff]
  %v1015 = vld [vmem:[%s4 + $0xf8] sm:$0xff]
  %1017 = vset.pattern.permute.xlu0 0
  %1018 = vperm.xlu0 %1017, %v984
  %v1019 = vpop.permute.xlu0 %1018
  %1022 = vset.pattern.permute.xlu0 0
  %1023 = vperm.xlu0 %1022, %v985
  %v1024 = vpop.permute.xlu0 %1023
  %1027 = vset.pattern.permute.xlu0 0
  %1028 = vperm.xlu0 %1027, %v986
  %v1029 = vpop.permute.xlu0 %1028
  %1032 = vset.pattern.permute.xlu0 0
  %1033 = vperm.xlu0 %1032, %v987
  %v1034 = vpop.permute.xlu0 %1033
  %1037 = vset.pattern.permute.xlu0 0
  %1038 = vperm.xlu0 %1037, %v988
  %v1039 = vpop.permute.xlu0 %1038
  %1042 = vset.pattern.permute.xlu0 0
  %1043 = vperm.xlu0 %1042, %v989
  %v1044 = vpop.permute.xlu0 %1043
  %1047 = vset.pattern.permute.xlu0 0
  %1048 = vperm.xlu0 %1047, %v990
  %v1049 = vpop.permute.xlu0 %1048
  %1052 = vset.pattern.permute.xlu0 0
  %1053 = vperm.xlu0 %1052, %v991
  %v1054 = vpop.permute.xlu0 %1053
  %1057 = vset.pattern.permute.xlu0 0
  %1058 = vperm.xlu0 %1057, %v992
  %v1059 = vpop.permute.xlu0 %1058
  %1062 = vset.pattern.permute.xlu0 0
  %1063 = vperm.xlu0 %1062, %v993
  %v1064 = vpop.permute.xlu0 %1063
  %1067 = vset.pattern.permute.xlu0 0
  %1068 = vperm.xlu0 %1067, %v994
  %v1069 = vpop.permute.xlu0 %1068
  %1072 = vset.pattern.permute.xlu0 0
  %1073 = vperm.xlu0 %1072, %v995
  %v1074 = vpop.permute.xlu0 %1073
  %1077 = vset.pattern.permute.xlu0 0
  %1078 = vperm.xlu0 %1077, %v996
  %v1079 = vpop.permute.xlu0 %1078
  %1082 = vset.pattern.permute.xlu0 0
  %1083 = vperm.xlu0 %1082, %v997
  %v1084 = vpop.permute.xlu0 %1083
  %1087 = vset.pattern.permute.xlu0 0
  %1088 = vperm.xlu0 %1087, %v998
  %v1089 = vpop.permute.xlu0 %1088
  %1092 = vset.pattern.permute.xlu0 0
  %1093 = vperm.xlu0 %1092, %v999
  %v1094 = vpop.permute.xlu0 %1093
  %1097 = vset.pattern.permute.xlu0 0
  %1098 = vperm.xlu0 %1097, %v1000
  %v1099 = vpop.permute.xlu0 %1098
  %1102 = vset.pattern.permute.xlu0 0
  %1103 = vperm.xlu0 %1102, %v1001
  %v1104 = vpop.permute.xlu0 %1103
  %1107 = vset.pattern.permute.xlu0 0
  %1108 = vperm.xlu0 %1107, %v1002
  %v1109 = vpop.permute.xlu0 %1108
  %1112 = vset.pattern.permute.xlu0 0
  %1113 = vperm.xlu0 %1112, %v1003
  %v1114 = vpop.permute.xlu0 %1113
  %1117 = vset.pattern.permute.xlu0 0
  %1118 = vperm.xlu0 %1117, %v1004
  %v1119 = vpop.permute.xlu0 %1118
  %1122 = vset.pattern.permute.xlu0 0
  %1123 = vperm.xlu0 %1122, %v1005
  %v1124 = vpop.permute.xlu0 %1123
  %1127 = vset.pattern.permute.xlu0 0
  %1128 = vperm.xlu0 %1127, %v1006
  %v1129 = vpop.permute.xlu0 %1128
  %1132 = vset.pattern.permute.xlu0 0
  %1133 = vperm.xlu0 %1132, %v1007
  %v1134 = vpop.permute.xlu0 %1133
  %1137 = vset.pattern.permute.xlu0 0
  %1138 = vperm.xlu0 %1137, %v1008
  %v1139 = vpop.permute.xlu0 %1138
  %1142 = vset.pattern.permute.xlu0 0
  %1143 = vperm.xlu0 %1142, %v1009
  %v1144 = vpop.permute.xlu0 %1143
  %1147 = vset.pattern.permute.xlu0 0
  %1148 = vperm.xlu0 %1147, %v1010
  %v1149 = vpop.permute.xlu0 %1148
  %1152 = vset.pattern.permute.xlu0 0
  %1153 = vperm.xlu0 %1152, %v1011
  %v1154 = vpop.permute.xlu0 %1153
  %1157 = vset.pattern.permute.xlu0 0
  %1158 = vperm.xlu0 %1157, %v1012
  %v1159 = vpop.permute.xlu0 %1158
  %1162 = vset.pattern.permute.xlu0 0
  %1163 = vperm.xlu0 %1162, %v1013
  %v1164 = vpop.permute.xlu0 %1163
  %1167 = vset.pattern.permute.xlu0 0
  %1168 = vperm.xlu0 %1167, %v1014
  %v1169 = vpop.permute.xlu0 %1168
  %1172 = vset.pattern.permute.xlu0 0
  %1173 = vperm.xlu0 %1172, %v1015
  %v1174 = vpop.permute.xlu0 %1173
  %v1208 = vunpack.c.l.b16 %v952
  %v1209 = vunpack.c.h.b16 %v952
  %v1210 = vunpack.c.l.b16 %v953
  %v1211 = vunpack.c.h.b16 %v953
  %v1212 = vunpack.c.l.b16 %v954
  %v1213 = vunpack.c.h.b16 %v954
  %v1214 = vunpack.c.l.b16 %v955
  %v1215 = vunpack.c.h.b16 %v955
  %v1216 = vunpack.c.l.b16 %v956
  %v1217 = vunpack.c.h.b16 %v956
  %v1218 = vunpack.c.l.b16 %v957
  %v1219 = vunpack.c.h.b16 %v957
  %v1220 = vunpack.c.l.b16 %v958
  %v1221 = vunpack.c.h.b16 %v958
  %v1222 = vunpack.c.l.b16 %v959
  %v1223 = vunpack.c.h.b16 %v959
  %v1224 = vunpack.c.l.b16 %v960
  %v1225 = vunpack.c.h.b16 %v960
  %v1226 = vunpack.c.l.b16 %v961
  %v1227 = vunpack.c.h.b16 %v961
  %v1228 = vunpack.c.l.b16 %v962
  %v1229 = vunpack.c.h.b16 %v962
  %v1230 = vunpack.c.l.b16 %v963
  %v1231 = vunpack.c.h.b16 %v963
  %v1232 = vunpack.c.l.b16 %v964
  %v1233 = vunpack.c.h.b16 %v964
  %v1234 = vunpack.c.l.b16 %v965
  %v1235 = vunpack.c.h.b16 %v965
  %v1236 = vunpack.c.l.b16 %v966
  %v1237 = vunpack.c.h.b16 %v966
  %v1238 = vunpack.c.l.b16 %v967
  %v1239 = vunpack.c.h.b16 %v967
  %v1240 = vunpack.c.l.b16 %v968
  %v1241 = vunpack.c.h.b16 %v968
  %v1242 = vunpack.c.l.b16 %v969
  %v1243 = vunpack.c.h.b16 %v969
  %v1244 = vunpack.c.l.b16 %v970
  %v1245 = vunpack.c.h.b16 %v970
  %v1246 = vunpack.c.l.b16 %v971
  %v1247 = vunpack.c.h.b16 %v971
  %v1248 = vunpack.c.l.b16 %v972
  %v1249 = vunpack.c.h.b16 %v972
  %v1250 = vunpack.c.l.b16 %v973
  %v1251 = vunpack.c.h.b16 %v973
  %v1252 = vunpack.c.l.b16 %v974
  %v1253 = vunpack.c.h.b16 %v974
  %v1254 = vunpack.c.l.b16 %v975
  %v1255 = vunpack.c.h.b16 %v975
  %v1256 = vunpack.c.l.b16 %v976
  %v1257 = vunpack.c.h.b16 %v976
  %v1258 = vunpack.c.l.b16 %v977
  %v1259 = vunpack.c.h.b16 %v977
  %v1260 = vunpack.c.l.b16 %v978
  %v1261 = vunpack.c.h.b16 %v978
  %v1262 = vunpack.c.l.b16 %v979
  %v1263 = vunpack.c.h.b16 %v979
  %v1264 = vunpack.c.l.b16 %v980
  %v1265 = vunpack.c.h.b16 %v980
  %v1266 = vunpack.c.l.b16 %v981
  %v1267 = vunpack.c.h.b16 %v981
  %v1268 = vunpack.c.l.b16 %v982
  %v1269 = vunpack.c.h.b16 %v982
  %v1270 = vunpack.c.l.b16 %v983
  %v1271 = vunpack.c.h.b16 %v983
  %v1272 = vpack.c.b16 %v1210, %v1208
  %v1273 = vpack.c.b16 %v1211, %v1209
  %v1274 = vpack.c.b16 %v1214, %v1212
  %v1275 = vpack.c.b16 %v1215, %v1213
  %v1276 = vpack.c.b16 %v1218, %v1216
  %v1277 = vpack.c.b16 %v1219, %v1217
  %v1278 = vpack.c.b16 %v1222, %v1220
  %v1279 = vpack.c.b16 %v1223, %v1221
  %v1280 = vpack.c.b16 %v1226, %v1224
  %v1281 = vpack.c.b16 %v1227, %v1225
  %v1282 = vpack.c.b16 %v1230, %v1228
  %v1283 = vpack.c.b16 %v1231, %v1229
  %v1284 = vpack.c.b16 %v1234, %v1232
  %v1285 = vpack.c.b16 %v1235, %v1233
  %v1286 = vpack.c.b16 %v1238, %v1236
  %v1287 = vpack.c.b16 %v1239, %v1237
  %v1288 = vpack.c.b16 %v1242, %v1240
  %v1289 = vpack.c.b16 %v1243, %v1241
  %v1290 = vpack.c.b16 %v1246, %v1244
  %v1291 = vpack.c.b16 %v1247, %v1245
  %v1292 = vpack.c.b16 %v1250, %v1248
  %v1293 = vpack.c.b16 %v1251, %v1249
  %v1294 = vpack.c.b16 %v1254, %v1252
  %v1295 = vpack.c.b16 %v1255, %v1253
  %v1296 = vpack.c.b16 %v1258, %v1256
  %v1297 = vpack.c.b16 %v1259, %v1257
  %v1298 = vpack.c.b16 %v1262, %v1260
  %v1299 = vpack.c.b16 %v1263, %v1261
  %v1300 = vpack.c.b16 %v1266, %v1264
  %v1301 = vpack.c.b16 %v1267, %v1265
  %v1302 = vpack.c.b16 %v1270, %v1268
  %v1303 = vpack.c.b16 %v1271, %v1269
  %1336 = vmatpush.bf16.msra.mxu0 %v916
  %1337 = vmatpush.bf16.msra.mxu0 %v912
  %1338 = vmatpush.bf16.msra.mxu0 %v908
  %1339 = vmatpush.bf16.msra.mxu0 %v904
  %1340 = vmatpush.bf16.msra.mxu0 %v900
  %1341 = vmatpush.bf16.msra.mxu0 %v896
  %1342 = vmatpush.bf16.msra.mxu0 %v892
  %1343 = vmatpush.bf16.msra.mxu0 %v888
  %1344 = vmatmul.bf16.gmra.mxu0 %v1272
  %v1345 = vpop.f32.mrf.mxu0
  %v1346 = vadd.f32 %v1019, %v1345
  %v1347 = vpop.f32.mrf.mxu0
  %v1348 = vadd.f32 %v1024, %v1347
  %1349 = vmatmul.bf16.gmra.mxu0 %v1274
  %v1350 = vpop.f32.mrf.mxu0
  %v1351 = vadd.f32 %v1029, %v1350
  %v1352 = vpop.f32.mrf.mxu0
  %v1353 = vadd.f32 %v1034, %v1352
  %1354 = vmatmul.bf16.gmra.mxu0 %v1276
  %v1355 = vpop.f32.mrf.mxu0
  %v1356 = vadd.f32 %v1039, %v1355
  %v1357 = vpop.f32.mrf.mxu0
  %v1358 = vadd.f32 %v1044, %v1357
  %1359 = vmatmul.bf16.gmra.mxu0 %v1278
  %v1360 = vpop.f32.mrf.mxu0
  %v1361 = vadd.f32 %v1049, %v1360
  %v1362 = vpop.f32.mrf.mxu0
  %v1363 = vadd.f32 %v1054, %v1362
  %1364 = vmatmul.bf16.gmra.mxu0 %v1280
  %v1365 = vpop.f32.mrf.mxu0
  %v1366 = vadd.f32 %v1059, %v1365
  %v1367 = vpop.f32.mrf.mxu0
  %v1368 = vadd.f32 %v1064, %v1367
  %1369 = vmatmul.bf16.gmra.mxu0 %v1282
  %v1370 = vpop.f32.mrf.mxu0
  %v1371 = vadd.f32 %v1069, %v1370
  %v1372 = vpop.f32.mrf.mxu0
  %v1373 = vadd.f32 %v1074, %v1372
  %1374 = vmatmul.bf16.gmra.mxu0 %v1284
  %v1375 = vpop.f32.mrf.mxu0
  %v1376 = vadd.f32 %v1079, %v1375
  %v1377 = vpop.f32.mrf.mxu0
  %v1378 = vadd.f32 %v1084, %v1377
  %1379 = vmatmul.bf16.gmra.mxu0 %v1286
  %v1380 = vpop.f32.mrf.mxu0
  %v1381 = vadd.f32 %v1089, %v1380
  %v1382 = vpop.f32.mrf.mxu0
  %v1383 = vadd.f32 %v1094, %v1382
  %1384 = vmatmul.bf16.gmra.mxu0 %v1288
  %v1385 = vpop.f32.mrf.mxu0
  %v1386 = vadd.f32 %v1099, %v1385
  %v1387 = vpop.f32.mrf.mxu0
  %v1388 = vadd.f32 %v1104, %v1387
  %1389 = vmatmul.bf16.gmra.mxu0 %v1290
  %v1390 = vpop.f32.mrf.mxu0
  %v1391 = vadd.f32 %v1109, %v1390
  %v1392 = vpop.f32.mrf.mxu0
  %v1393 = vadd.f32 %v1114, %v1392
  %1394 = vmatmul.bf16.gmra.mxu0 %v1292
  %v1395 = vpop.f32.mrf.mxu0
  %v1396 = vadd.f32 %v1119, %v1395
  %v1397 = vpop.f32.mrf.mxu0
  %v1398 = vadd.f32 %v1124, %v1397
  %1399 = vmatmul.bf16.gmra.mxu0 %v1294
  %v1400 = vpop.f32.mrf.mxu0
  %v1401 = vadd.f32 %v1129, %v1400
  %v1402 = vpop.f32.mrf.mxu0
  %v1403 = vadd.f32 %v1134, %v1402
  %1404 = vmatmul.bf16.gmra.mxu0 %v1296
  %v1405 = vpop.f32.mrf.mxu0
  %v1406 = vadd.f32 %v1139, %v1405
  %v1407 = vpop.f32.mrf.mxu0
  %v1408 = vadd.f32 %v1144, %v1407
  %1409 = vmatmul.bf16.gmra.mxu0 %v1298
  %v1410 = vpop.f32.mrf.mxu0
  %v1411 = vadd.f32 %v1149, %v1410
  %v1412 = vpop.f32.mrf.mxu0
  %v1413 = vadd.f32 %v1154, %v1412
  %1414 = vmatmul.bf16.gmra.mxu0 %v1300
  %v1415 = vpop.f32.mrf.mxu0
  %v1416 = vadd.f32 %v1159, %v1415
  %v1417 = vpop.f32.mrf.mxu0
  %v1418 = vadd.f32 %v1164, %v1417
  %1419 = vmatmul.bf16.gmra.mxu0 %v1302
  %v1420 = vpop.f32.mrf.mxu0
  %v1421 = vadd.f32 %v1169, %v1420
  %v1422 = vpop.f32.mrf.mxu0
  %v1423 = vadd.f32 %v1174, %v1422
  %1424 = vdwg.mxu0
  %1425 = vmatpush.bf16.msra.mxu0 %v948
  %1426 = vmatpush.bf16.msra.mxu0 %v944
  %1427 = vmatpush.bf16.msra.mxu0 %v940
  %1428 = vmatpush.bf16.msra.mxu0 %v936
  %1429 = vmatpush.bf16.msra.mxu0 %v932
  %1430 = vmatpush.bf16.msra.mxu0 %v928
  %1431 = vmatpush.bf16.msra.mxu0 %v924
  %1432 = vmatpush.bf16.msra.mxu0 %v920
  %1433 = vmatmul.bf16.gmra.mxu0 %v1273
  %v1434 = vpop.f32.mrf.mxu0
  %v1435 = vadd.f32 %v1346, %v1434
  %v1436 = vpop.f32.mrf.mxu0
  %v1437 = vadd.f32 %v1348, %v1436
  %1438 = vmatmul.bf16.gmra.mxu0 %v1275
  %v1439 = vpop.f32.mrf.mxu0
  %v1440 = vadd.f32 %v1351, %v1439
  %v1441 = vpop.f32.mrf.mxu0
  %v1442 = vadd.f32 %v1353, %v1441
  %1443 = vmatmul.bf16.gmra.mxu0 %v1277
  %v1444 = vpop.f32.mrf.mxu0
  %v1445 = vadd.f32 %v1356, %v1444
  %v1446 = vpop.f32.mrf.mxu0
  %v1447 = vadd.f32 %v1358, %v1446
  %1448 = vmatmul.bf16.gmra.mxu0 %v1279
  %v1449 = vpop.f32.mrf.mxu0
  %v1450 = vadd.f32 %v1361, %v1449
  %v1451 = vpop.f32.mrf.mxu0
  %v1452 = vadd.f32 %v1363, %v1451
  %1453 = vmatmul.bf16.gmra.mxu0 %v1281
  %v1454 = vpop.f32.mrf.mxu0
  %v1455 = vadd.f32 %v1366, %v1454
  %v1456 = vpop.f32.mrf.mxu0
  %v1457 = vadd.f32 %v1368, %v1456
  %1458 = vmatmul.bf16.gmra.mxu0 %v1283
  %v1459 = vpop.f32.mrf.mxu0
  %v1460 = vadd.f32 %v1371, %v1459
  %v1461 = vpop.f32.mrf.mxu0
  %v1462 = vadd.f32 %v1373, %v1461
  %1463 = vmatmul.bf16.gmra.mxu0 %v1285
  %v1464 = vpop.f32.mrf.mxu0
  %v1465 = vadd.f32 %v1376, %v1464
  %v1466 = vpop.f32.mrf.mxu0
  %v1467 = vadd.f32 %v1378, %v1466
  %1468 = vmatmul.bf16.gmra.mxu0 %v1287
  %v1469 = vpop.f32.mrf.mxu0
  %v1470 = vadd.f32 %v1381, %v1469
  %v1471 = vpop.f32.mrf.mxu0
  %v1472 = vadd.f32 %v1383, %v1471
  %1473 = vmatmul.bf16.gmra.mxu0 %v1289
  %v1474 = vpop.f32.mrf.mxu0
  %v1475 = vadd.f32 %v1386, %v1474
  %v1476 = vpop.f32.mrf.mxu0
  %v1477 = vadd.f32 %v1388, %v1476
  %1478 = vmatmul.bf16.gmra.mxu0 %v1291
  %v1479 = vpop.f32.mrf.mxu0
  %v1480 = vadd.f32 %v1391, %v1479
  %v1481 = vpop.f32.mrf.mxu0
  %v1482 = vadd.f32 %v1393, %v1481
  %1483 = vmatmul.bf16.gmra.mxu0 %v1293
  %v1484 = vpop.f32.mrf.mxu0
  %v1485 = vadd.f32 %v1396, %v1484
  %v1486 = vpop.f32.mrf.mxu0
  %v1487 = vadd.f32 %v1398, %v1486
  %1488 = vmatmul.bf16.gmra.mxu0 %v1295
  %v1489 = vpop.f32.mrf.mxu0
  %v1490 = vadd.f32 %v1401, %v1489
  %v1491 = vpop.f32.mrf.mxu0
  %v1492 = vadd.f32 %v1403, %v1491
  %1493 = vmatmul.bf16.gmra.mxu0 %v1297
  %v1494 = vpop.f32.mrf.mxu0
  %v1495 = vadd.f32 %v1406, %v1494
  %v1496 = vpop.f32.mrf.mxu0
  %v1497 = vadd.f32 %v1408, %v1496
  %1498 = vmatmul.bf16.gmra.mxu0 %v1299
  %v1499 = vpop.f32.mrf.mxu0
  %v1500 = vadd.f32 %v1411, %v1499
  %v1501 = vpop.f32.mrf.mxu0
  %v1502 = vadd.f32 %v1413, %v1501
  %1503 = vmatmul.bf16.gmra.mxu0 %v1301
  %v1504 = vpop.f32.mrf.mxu0
  %v1505 = vadd.f32 %v1416, %v1504
  %v1506 = vpop.f32.mrf.mxu0
  %v1507 = vadd.f32 %v1418, %v1506
  %1508 = vmatmul.bf16.gmra.mxu0 %v1303
  %v1509 = vpop.f32.mrf.mxu0
  %v1510 = vadd.f32 %v1421, %v1509
  %v1511 = vpop.f32.mrf.mxu0
  %v1512 = vadd.f32 %v1423, %v1511
  %1513 = vdwg.mxu0
  %1514 = vmatpush.bf16.msra.mxu0 %v917
  %1515 = vmatpush.bf16.msra.mxu0 %v913
  %1516 = vmatpush.bf16.msra.mxu0 %v909
  %1517 = vmatpush.bf16.msra.mxu0 %v905
  %1518 = vmatpush.bf16.msra.mxu0 %v901
  %1519 = vmatpush.bf16.msra.mxu0 %v897
  %1520 = vmatpush.bf16.msra.mxu0 %v893
  %1521 = vmatpush.bf16.msra.mxu0 %v889
  %1522 = vmatmul.bf16.gmra.mxu0 %v1272
  %v1523 = vpop.f32.mrf.mxu0
  %v1524 = vadd.f32 %v1019, %v1523
  %v1525 = vpop.f32.mrf.mxu0
  %v1526 = vadd.f32 %v1024, %v1525
  %1527 = vmatmul.bf16.gmra.mxu0 %v1274
  %v1528 = vpop.f32.mrf.mxu0
  %v1529 = vadd.f32 %v1029, %v1528
  %v1530 = vpop.f32.mrf.mxu0
  %v1531 = vadd.f32 %v1034, %v1530
  %1532 = vmatmul.bf16.gmra.mxu0 %v1276
  %v1533 = vpop.f32.mrf.mxu0
  %v1534 = vadd.f32 %v1039, %v1533
  %v1535 = vpop.f32.mrf.mxu0
  %v1536 = vadd.f32 %v1044, %v1535
  %1537 = vmatmul.bf16.gmra.mxu0 %v1278
  %v1538 = vpop.f32.mrf.mxu0
  %v1539 = vadd.f32 %v1049, %v1538
  %v1540 = vpop.f32.mrf.mxu0
  %v1541 = vadd.f32 %v1054, %v1540
  %1542 = vmatmul.bf16.gmra.mxu0 %v1280
  %v1543 = vpop.f32.mrf.mxu0
  %v1544 = vadd.f32 %v1059, %v1543
  %v1545 = vpop.f32.mrf.mxu0
  %v1546 = vadd.f32 %v1064, %v1545
  %1547 = vmatmul.bf16.gmra.mxu0 %v1282
  %v1548 = vpop.f32.mrf.mxu0
  %v1549 = vadd.f32 %v1069, %v1548
  %v1550 = vpop.f32.mrf.mxu0
  %v1551 = vadd.f32 %v1074, %v1550
  %1552 = vmatmul.bf16.gmra.mxu0 %v1284
  %v1553 = vpop.f32.mrf.mxu0
  %v1554 = vadd.f32 %v1079, %v1553
  %v1555 = vpop.f32.mrf.mxu0
  %v1556 = vadd.f32 %v1084, %v1555
  %1557 = vmatmul.bf16.gmra.mxu0 %v1286
  %v1558 = vpop.f32.mrf.mxu0
  %v1559 = vadd.f32 %v1089, %v1558
  %v1560 = vpop.f32.mrf.mxu0
  %v1561 = vadd.f32 %v1094, %v1560
  %1562 = vmatmul.bf16.gmra.mxu0 %v1288
  %v1563 = vpop.f32.mrf.mxu0
  %v1564 = vadd.f32 %v1099, %v1563
  %v1565 = vpop.f32.mrf.mxu0
  %v1566 = vadd.f32 %v1104, %v1565
  %1567 = vmatmul.bf16.gmra.mxu0 %v1290
  %v1568 = vpop.f32.mrf.mxu0
  %v1569 = vadd.f32 %v1109, %v1568
  %v1570 = vpop.f32.mrf.mxu0
  %v1571 = vadd.f32 %v1114, %v1570
  %1572 = vmatmul.bf16.gmra.mxu0 %v1292
  %v1573 = vpop.f32.mrf.mxu0
  %v1574 = vadd.f32 %v1119, %v1573
  %v1575 = vpop.f32.mrf.mxu0
  %v1576 = vadd.f32 %v1124, %v1575
  %1577 = vmatmul.bf16.gmra.mxu0 %v1294
  %v1578 = vpop.f32.mrf.mxu0
  %v1579 = vadd.f32 %v1129, %v1578
  %v1580 = vpop.f32.mrf.mxu0
  %v1581 = vadd.f32 %v1134, %v1580
  %1582 = vmatmul.bf16.gmra.mxu0 %v1296
  %v1583 = vpop.f32.mrf.mxu0
  %v1584 = vadd.f32 %v1139, %v1583
  %v1585 = vpop.f32.mrf.mxu0
  %v1586 = vadd.f32 %v1144, %v1585
  %1587 = vmatmul.bf16.gmra.mxu0 %v1298
  %v1588 = vpop.f32.mrf.mxu0
  %v1589 = vadd.f32 %v1149, %v1588
  %v1590 = vpop.f32.mrf.mxu0
  %v1591 = vadd.f32 %v1154, %v1590
  %1592 = vmatmul.bf16.gmra.mxu0 %v1300
  %v1593 = vpop.f32.mrf.mxu0
  %v1594 = vadd.f32 %v1159, %v1593
  %v1595 = vpop.f32.mrf.mxu0
  %v1596 = vadd.f32 %v1164, %v1595
  %1597 = vmatmul.bf16.gmra.mxu0 %v1302
  %v1598 = vpop.f32.mrf.mxu0
  %v1599 = vadd.f32 %v1169, %v1598
  %v1600 = vpop.f32.mrf.mxu0
  %v1601 = vadd.f32 %v1174, %v1600
  %1602 = vdwg.mxu0
  %1603 = vmatpush.bf16.msra.mxu0 %v949
  %1604 = vmatpush.bf16.msra.mxu0 %v945
  %1605 = vmatpush.bf16.msra.mxu0 %v941
  %1606 = vmatpush.bf16.msra.mxu0 %v937
  %1607 = vmatpush.bf16.msra.mxu0 %v933
  %1608 = vmatpush.bf16.msra.mxu0 %v929
  %1609 = vmatpush.bf16.msra.mxu0 %v925
  %1610 = vmatpush.bf16.msra.mxu0 %v921
  %1611 = vmatmul.bf16.gmra.mxu0 %v1273
  %v1612 = vpop.f32.mrf.mxu0
  %v1613 = vadd.f32 %v1524, %v1612
  %v1614 = vpop.f32.mrf.mxu0
  %v1615 = vadd.f32 %v1526, %v1614
  %1616 = vmatmul.bf16.gmra.mxu0 %v1275
  %v1617 = vpop.f32.mrf.mxu0
  %v1618 = vadd.f32 %v1529, %v1617
  %v1619 = vpop.f32.mrf.mxu0
  %v1620 = vadd.f32 %v1531, %v1619
  %1621 = vmatmul.bf16.gmra.mxu0 %v1277
  %v1622 = vpop.f32.mrf.mxu0
  %v1623 = vadd.f32 %v1534, %v1622
  %v1624 = vpop.f32.mrf.mxu0
  %v1625 = vadd.f32 %v1536, %v1624
  %1626 = vmatmul.bf16.gmra.mxu0 %v1279
  %v1627 = vpop.f32.mrf.mxu0
  %v1628 = vadd.f32 %v1539, %v1627
  %v1629 = vpop.f32.mrf.mxu0
  %v1630 = vadd.f32 %v1541, %v1629
  %1631 = vmatmul.bf16.gmra.mxu0 %v1281
  %v1632 = vpop.f32.mrf.mxu0
  %v1633 = vadd.f32 %v1544, %v1632
  %v1634 = vpop.f32.mrf.mxu0
  %v1635 = vadd.f32 %v1546, %v1634
  %1636 = vmatmul.bf16.gmra.mxu0 %v1283
  %v1637 = vpop.f32.mrf.mxu0
  %v1638 = vadd.f32 %v1549, %v1637
  %v1639 = vpop.f32.mrf.mxu0
  %v1640 = vadd.f32 %v1551, %v1639
  %1641 = vmatmul.bf16.gmra.mxu0 %v1285
  %v1642 = vpop.f32.mrf.mxu0
  %v1643 = vadd.f32 %v1554, %v1642
  %v1644 = vpop.f32.mrf.mxu0
  %v1645 = vadd.f32 %v1556, %v1644
  %1646 = vmatmul.bf16.gmra.mxu0 %v1287
  %v1647 = vpop.f32.mrf.mxu0
  %v1648 = vadd.f32 %v1559, %v1647
  %v1649 = vpop.f32.mrf.mxu0
  %v1650 = vadd.f32 %v1561, %v1649
  %1651 = vmatmul.bf16.gmra.mxu0 %v1289
  %v1652 = vpop.f32.mrf.mxu0
  %v1653 = vadd.f32 %v1564, %v1652
  %v1654 = vpop.f32.mrf.mxu0
  %v1655 = vadd.f32 %v1566, %v1654
  %1656 = vmatmul.bf16.gmra.mxu0 %v1291
  %v1657 = vpop.f32.mrf.mxu0
  %v1658 = vadd.f32 %v1569, %v1657
  %v1659 = vpop.f32.mrf.mxu0
  %v1660 = vadd.f32 %v1571, %v1659
  %1661 = vmatmul.bf16.gmra.mxu0 %v1293
  %v1662 = vpop.f32.mrf.mxu0
  %v1663 = vadd.f32 %v1574, %v1662
  %v1664 = vpop.f32.mrf.mxu0
  %v1665 = vadd.f32 %v1576, %v1664
  %1666 = vmatmul.bf16.gmra.mxu0 %v1295
  %v1667 = vpop.f32.mrf.mxu0
  %v1668 = vadd.f32 %v1579, %v1667
  %v1669 = vpop.f32.mrf.mxu0
  %v1670 = vadd.f32 %v1581, %v1669
  %1671 = vmatmul.bf16.gmra.mxu0 %v1297
  %v1672 = vpop.f32.mrf.mxu0
  %v1673 = vadd.f32 %v1584, %v1672
  %v1674 = vpop.f32.mrf.mxu0
  %v1675 = vadd.f32 %v1586, %v1674
  %1676 = vmatmul.bf16.gmra.mxu0 %v1299
  %v1677 = vpop.f32.mrf.mxu0
  %v1678 = vadd.f32 %v1589, %v1677
  %v1679 = vpop.f32.mrf.mxu0
  %v1680 = vadd.f32 %v1591, %v1679
  %1681 = vmatmul.bf16.gmra.mxu0 %v1301
  %v1682 = vpop.f32.mrf.mxu0
  %v1683 = vadd.f32 %v1594, %v1682
  %v1684 = vpop.f32.mrf.mxu0
  %v1685 = vadd.f32 %v1596, %v1684
  %1686 = vmatmul.bf16.gmra.mxu0 %v1303
  %v1687 = vpop.f32.mrf.mxu0
  %v1688 = vadd.f32 %v1599, %v1687
  %v1689 = vpop.f32.mrf.mxu0
  %v1690 = vadd.f32 %v1601, %v1689
  %1691 = vdwg.mxu0
  %1692 = vmatpush.bf16.msra.mxu0 %v918
  %1693 = vmatpush.bf16.msra.mxu0 %v914
  %1694 = vmatpush.bf16.msra.mxu0 %v910
  %1695 = vmatpush.bf16.msra.mxu0 %v906
  %1696 = vmatpush.bf16.msra.mxu0 %v902
  %1697 = vmatpush.bf16.msra.mxu0 %v898
  %1698 = vmatpush.bf16.msra.mxu0 %v894
  %1699 = vmatpush.bf16.msra.mxu0 %v890
  %1700 = vmatmul.bf16.gmra.mxu0 %v1272
  %v1701 = vpop.f32.mrf.mxu0
  %v1702 = vadd.f32 %v1019, %v1701
  %v1703 = vpop.f32.mrf.mxu0
  %v1704 = vadd.f32 %v1024, %v1703
  %1705 = vmatmul.bf16.gmra.mxu0 %v1274
  %v1706 = vpop.f32.mrf.mxu0
  %v1707 = vadd.f32 %v1029, %v1706
  %v1708 = vpop.f32.mrf.mxu0
  %v1709 = vadd.f32 %v1034, %v1708
  %1710 = vmatmul.bf16.gmra.mxu0 %v1276
  %v1711 = vpop.f32.mrf.mxu0
  %v1712 = vadd.f32 %v1039, %v1711
  %v1713 = vpop.f32.mrf.mxu0
  %v1714 = vadd.f32 %v1044, %v1713
  %1715 = vmatmul.bf16.gmra.mxu0 %v1278
  %v1716 = vpop.f32.mrf.mxu0
  %v1717 = vadd.f32 %v1049, %v1716
  %v1718 = vpop.f32.mrf.mxu0
  %v1719 = vadd.f32 %v1054, %v1718
  %1720 = vmatmul.bf16.gmra.mxu0 %v1280
  %v1721 = vpop.f32.mrf.mxu0
  %v1722 = vadd.f32 %v1059, %v1721
  %v1723 = vpop.f32.mrf.mxu0
  %v1724 = vadd.f32 %v1064, %v1723
  %1725 = vmatmul.bf16.gmra.mxu0 %v1282
  %v1726 = vpop.f32.mrf.mxu0
  %v1727 = vadd.f32 %v1069, %v1726
  %v1728 = vpop.f32.mrf.mxu0
  %v1729 = vadd.f32 %v1074, %v1728
  %1730 = vmatmul.bf16.gmra.mxu0 %v1284
  %v1731 = vpop.f32.mrf.mxu0
  %v1732 = vadd.f32 %v1079, %v1731
  %v1733 = vpop.f32.mrf.mxu0
  %v1734 = vadd.f32 %v1084, %v1733
  %1735 = vmatmul.bf16.gmra.mxu0 %v1286
  %v1736 = vpop.f32.mrf.mxu0
  %v1737 = vadd.f32 %v1089, %v1736
  %v1738 = vpop.f32.mrf.mxu0
  %v1739 = vadd.f32 %v1094, %v1738
  %1740 = vmatmul.bf16.gmra.mxu0 %v1288
  %v1741 = vpop.f32.mrf.mxu0
  %v1742 = vadd.f32 %v1099, %v1741
  %v1743 = vpop.f32.mrf.mxu0
  %v1744 = vadd.f32 %v1104, %v1743
  %1745 = vmatmul.bf16.gmra.mxu0 %v1290
  %v1746 = vpop.f32.mrf.mxu0
  %v1747 = vadd.f32 %v1109, %v1746
  %v1748 = vpop.f32.mrf.mxu0
  %v1749 = vadd.f32 %v1114, %v1748
  %1750 = vmatmul.bf16.gmra.mxu0 %v1292
  %v1751 = vpop.f32.mrf.mxu0
  %v1752 = vadd.f32 %v1119, %v1751
  %v1753 = vpop.f32.mrf.mxu0
  %v1754 = vadd.f32 %v1124, %v1753
  %1755 = vmatmul.bf16.gmra.mxu0 %v1294
  %v1756 = vpop.f32.mrf.mxu0
  %v1757 = vadd.f32 %v1129, %v1756
  %v1758 = vpop.f32.mrf.mxu0
  %v1759 = vadd.f32 %v1134, %v1758
  %1760 = vmatmul.bf16.gmra.mxu0 %v1296
  %v1761 = vpop.f32.mrf.mxu0
  %v1762 = vadd.f32 %v1139, %v1761
  %v1763 = vpop.f32.mrf.mxu0
  %v1764 = vadd.f32 %v1144, %v1763
  %1765 = vmatmul.bf16.gmra.mxu0 %v1298
  %v1766 = vpop.f32.mrf.mxu0
  %v1767 = vadd.f32 %v1149, %v1766
  %v1768 = vpop.f32.mrf.mxu0
  %v1769 = vadd.f32 %v1154, %v1768
  %1770 = vmatmul.bf16.gmra.mxu0 %v1300
  %v1771 = vpop.f32.mrf.mxu0
  %v1772 = vadd.f32 %v1159, %v1771
  %v1773 = vpop.f32.mrf.mxu0
  %v1774 = vadd.f32 %v1164, %v1773
  %1775 = vmatmul.bf16.gmra.mxu0 %v1302
  %v1776 = vpop.f32.mrf.mxu0
  %v1777 = vadd.f32 %v1169, %v1776
  %v1778 = vpop.f32.mrf.mxu0
  %v1779 = vadd.f32 %v1174, %v1778
  %1780 = vdwg.mxu0
  %1781 = vmatpush.bf16.msra.mxu0 %v950
  %1782 = vmatpush.bf16.msra.mxu0 %v946
  %1783 = vmatpush.bf16.msra.mxu0 %v942
  %1784 = vmatpush.bf16.msra.mxu0 %v938
  %1785 = vmatpush.bf16.msra.mxu0 %v934
  %1786 = vmatpush.bf16.msra.mxu0 %v930
  %1787 = vmatpush.bf16.msra.mxu0 %v926
  %1788 = vmatpush.bf16.msra.mxu0 %v922
  %1789 = vmatmul.bf16.gmra.mxu0 %v1273
  %v1790 = vpop.f32.mrf.mxu0
  %v1791 = vadd.f32 %v1702, %v1790
  %v1792 = vpop.f32.mrf.mxu0
  %v1793 = vadd.f32 %v1704, %v1792
  %1794 = vmatmul.bf16.gmra.mxu0 %v1275
  %v1795 = vpop.f32.mrf.mxu0
  %v1796 = vadd.f32 %v1707, %v1795
  %v1797 = vpop.f32.mrf.mxu0
  %v1798 = vadd.f32 %v1709, %v1797
  %1799 = vmatmul.bf16.gmra.mxu0 %v1277
  %v1800 = vpop.f32.mrf.mxu0
  %v1801 = vadd.f32 %v1712, %v1800
  %v1802 = vpop.f32.mrf.mxu0
  %v1803 = vadd.f32 %v1714, %v1802
  %1804 = vmatmul.bf16.gmra.mxu0 %v1279
  %v1805 = vpop.f32.mrf.mxu0
  %v1806 = vadd.f32 %v1717, %v1805
  %v1807 = vpop.f32.mrf.mxu0
  %v1808 = vadd.f32 %v1719, %v1807
  %1809 = vmatmul.bf16.gmra.mxu0 %v1281
  %v1810 = vpop.f32.mrf.mxu0
  %v1811 = vadd.f32 %v1722, %v1810
  %v1812 = vpop.f32.mrf.mxu0
  %v1813 = vadd.f32 %v1724, %v1812
  %1814 = vmatmul.bf16.gmra.mxu0 %v1283
  %v1815 = vpop.f32.mrf.mxu0
  %v1816 = vadd.f32 %v1727, %v1815
  %v1817 = vpop.f32.mrf.mxu0
  %v1818 = vadd.f32 %v1729, %v1817
  %1819 = vmatmul.bf16.gmra.mxu0 %v1285
  %v1820 = vpop.f32.mrf.mxu0
  %v1821 = vadd.f32 %v1732, %v1820
  %v1822 = vpop.f32.mrf.mxu0
  %v1823 = vadd.f32 %v1734, %v1822
  %1824 = vmatmul.bf16.gmra.mxu0 %v1287
  %v1825 = vpop.f32.mrf.mxu0
  %v1826 = vadd.f32 %v1737, %v1825
  %v1827 = vpop.f32.mrf.mxu0
  %v1828 = vadd.f32 %v1739, %v1827
  %1829 = vmatmul.bf16.gmra.mxu0 %v1289
  %v1830 = vpop.f32.mrf.mxu0
  %v1831 = vadd.f32 %v1742, %v1830
  %v1832 = vpop.f32.mrf.mxu0
  %v1833 = vadd.f32 %v1744, %v1832
  %1834 = vmatmul.bf16.gmra.mxu0 %v1291
  %v1835 = vpop.f32.mrf.mxu0
  %v1836 = vadd.f32 %v1747, %v1835
  %v1837 = vpop.f32.mrf.mxu0
  %v1838 = vadd.f32 %v1749, %v1837
  %1839 = vmatmul.bf16.gmra.mxu0 %v1293
  %v1840 = vpop.f32.mrf.mxu0
  %v1841 = vadd.f32 %v1752, %v1840
  %v1842 = vpop.f32.mrf.mxu0
  %v1843 = vadd.f32 %v1754, %v1842
  %1844 = vmatmul.bf16.gmra.mxu0 %v1295
  %v1845 = vpop.f32.mrf.mxu0
  %v1846 = vadd.f32 %v1757, %v1845
  %v1847 = vpop.f32.mrf.mxu0
  %v1848 = vadd.f32 %v1759, %v1847
  %1849 = vmatmul.bf16.gmra.mxu0 %v1297
  %v1850 = vpop.f32.mrf.mxu0
  %v1851 = vadd.f32 %v1762, %v1850
  %v1852 = vpop.f32.mrf.mxu0
  %v1853 = vadd.f32 %v1764, %v1852
  %1854 = vmatmul.bf16.gmra.mxu0 %v1299
  %v1855 = vpop.f32.mrf.mxu0
  %v1856 = vadd.f32 %v1767, %v1855
  %v1857 = vpop.f32.mrf.mxu0
  %v1858 = vadd.f32 %v1769, %v1857
  %1859 = vmatmul.bf16.gmra.mxu0 %v1301
  %v1860 = vpop.f32.mrf.mxu0
  %v1861 = vadd.f32 %v1772, %v1860
  %v1862 = vpop.f32.mrf.mxu0
  %v1863 = vadd.f32 %v1774, %v1862
  %1864 = vmatmul.bf16.gmra.mxu0 %v1303
  %v1865 = vpop.f32.mrf.mxu0
  %v1866 = vadd.f32 %v1777, %v1865
  %v1867 = vpop.f32.mrf.mxu0
  %v1868 = vadd.f32 %v1779, %v1867
  %1869 = vdwg.mxu0
  %1870 = vmatpush.bf16.msra.mxu0 %v919
  %1871 = vmatpush.bf16.msra.mxu0 %v915
  %1872 = vmatpush.bf16.msra.mxu0 %v911
  %1873 = vmatpush.bf16.msra.mxu0 %v907
  %1874 = vmatpush.bf16.msra.mxu0 %v903
  %1875 = vmatpush.bf16.msra.mxu0 %v899
  %1876 = vmatpush.bf16.msra.mxu0 %v895
  %1877 = vmatpush.bf16.msra.mxu0 %v891
  %1878 = vmatmul.bf16.gmra.mxu0 %v1272
  %v1879 = vpop.f32.mrf.mxu0
  %v1880 = vadd.f32 %v1019, %v1879
  %v1881 = vpop.f32.mrf.mxu0
  %v1882 = vadd.f32 %v1024, %v1881
  %1883 = vmatmul.bf16.gmra.mxu0 %v1274
  %v1884 = vpop.f32.mrf.mxu0
  %v1885 = vadd.f32 %v1029, %v1884
  %v1886 = vpop.f32.mrf.mxu0
  %v1887 = vadd.f32 %v1034, %v1886
  %1888 = vmatmul.bf16.gmra.mxu0 %v1276
  %v1889 = vpop.f32.mrf.mxu0
  %v1890 = vadd.f32 %v1039, %v1889
  %v1891 = vpop.f32.mrf.mxu0
  %v1892 = vadd.f32 %v1044, %v1891
  %1893 = vmatmul.bf16.gmra.mxu0 %v1278
  %v1894 = vpop.f32.mrf.mxu0
  %v1895 = vadd.f32 %v1049, %v1894
  %v1896 = vpop.f32.mrf.mxu0
  %v1897 = vadd.f32 %v1054, %v1896
  %1898 = vmatmul.bf16.gmra.mxu0 %v1280
  %v1899 = vpop.f32.mrf.mxu0
  %v1900 = vadd.f32 %v1059, %v1899
  %v1901 = vpop.f32.mrf.mxu0
  %v1902 = vadd.f32 %v1064, %v1901
  %1903 = vmatmul.bf16.gmra.mxu0 %v1282
  %v1904 = vpop.f32.mrf.mxu0
  %v1905 = vadd.f32 %v1069, %v1904
  %v1906 = vpop.f32.mrf.mxu0
  %v1907 = vadd.f32 %v1074, %v1906
  %1908 = vmatmul.bf16.gmra.mxu0 %v1284
  %v1909 = vpop.f32.mrf.mxu0
  %v1910 = vadd.f32 %v1079, %v1909
  %v1911 = vpop.f32.mrf.mxu0
  %v1912 = vadd.f32 %v1084, %v1911
  %1913 = vmatmul.bf16.gmra.mxu0 %v1286
  %v1914 = vpop.f32.mrf.mxu0
  %v1915 = vadd.f32 %v1089, %v1914
  %v1916 = vpop.f32.mrf.mxu0
  %v1917 = vadd.f32 %v1094, %v1916
  %1918 = vmatmul.bf16.gmra.mxu0 %v1288
  %v1919 = vpop.f32.mrf.mxu0
  %v1920 = vadd.f32 %v1099, %v1919
  %v1921 = vpop.f32.mrf.mxu0
  %v1922 = vadd.f32 %v1104, %v1921
  %1923 = vmatmul.bf16.gmra.mxu0 %v1290
  %v1924 = vpop.f32.mrf.mxu0
  %v1925 = vadd.f32 %v1109, %v1924
  %v1926 = vpop.f32.mrf.mxu0
  %v1927 = vadd.f32 %v1114, %v1926
  %1928 = vmatmul.bf16.gmra.mxu0 %v1292
  %v1929 = vpop.f32.mrf.mxu0
  %v1930 = vadd.f32 %v1119, %v1929
  %v1931 = vpop.f32.mrf.mxu0
  %v1932 = vadd.f32 %v1124, %v1931
  %1933 = vmatmul.bf16.gmra.mxu0 %v1294
  %v1934 = vpop.f32.mrf.mxu0
  %v1935 = vadd.f32 %v1129, %v1934
  %v1936 = vpop.f32.mrf.mxu0
  %v1937 = vadd.f32 %v1134, %v1936
  %1938 = vmatmul.bf16.gmra.mxu0 %v1296
  %v1939 = vpop.f32.mrf.mxu0
  %v1940 = vadd.f32 %v1139, %v1939
  %v1941 = vpop.f32.mrf.mxu0
  %v1942 = vadd.f32 %v1144, %v1941
  %1943 = vmatmul.bf16.gmra.mxu0 %v1298
  %v1944 = vpop.f32.mrf.mxu0
  %v1945 = vadd.f32 %v1149, %v1944
  %v1946 = vpop.f32.mrf.mxu0
  %v1947 = vadd.f32 %v1154, %v1946
  %1948 = vmatmul.bf16.gmra.mxu0 %v1300
  %v1949 = vpop.f32.mrf.mxu0
  %v1950 = vadd.f32 %v1159, %v1949
  %v1951 = vpop.f32.mrf.mxu0
  %v1952 = vadd.f32 %v1164, %v1951
  %1953 = vmatmul.bf16.gmra.mxu0 %v1302
  %v1954 = vpop.f32.mrf.mxu0
  %v1955 = vadd.f32 %v1169, %v1954
  %v1956 = vpop.f32.mrf.mxu0
  %v1957 = vadd.f32 %v1174, %v1956
  %1958 = vdwg.mxu0
  %1959 = vmatpush.bf16.msra.mxu0 %v951
  %1960 = vmatpush.bf16.msra.mxu0 %v947
  %1961 = vmatpush.bf16.msra.mxu0 %v943
  %1962 = vmatpush.bf16.msra.mxu0 %v939
  %1963 = vmatpush.bf16.msra.mxu0 %v935
  %1964 = vmatpush.bf16.msra.mxu0 %v931
  %1965 = vmatpush.bf16.msra.mxu0 %v927
  %1966 = vmatpush.bf16.msra.mxu0 %v923
  %1967 = vmatmul.bf16.gmra.mxu0 %v1273
  %v1968 = vpop.f32.mrf.mxu0
  %v1969 = vadd.f32 %v1880, %v1968
  %v1970 = vpop.f32.mrf.mxu0
  %v1971 = vadd.f32 %v1882, %v1970
  %1972 = vmatmul.bf16.gmra.mxu0 %v1275
  %v1973 = vpop.f32.mrf.mxu0
  %v1974 = vadd.f32 %v1885, %v1973
  %v1975 = vpop.f32.mrf.mxu0
  %v1976 = vadd.f32 %v1887, %v1975
  %1977 = vmatmul.bf16.gmra.mxu0 %v1277
  %v1978 = vpop.f32.mrf.mxu0
  %v1979 = vadd.f32 %v1890, %v1978
  %v1980 = vpop.f32.mrf.mxu0
  %v1981 = vadd.f32 %v1892, %v1980
  %1982 = vmatmul.bf16.gmra.mxu0 %v1279
  %v1983 = vpop.f32.mrf.mxu0
  %v1984 = vadd.f32 %v1895, %v1983
  %v1985 = vpop.f32.mrf.mxu0
  %v1986 = vadd.f32 %v1897, %v1985
  %1987 = vmatmul.bf16.gmra.mxu0 %v1281
  %v1988 = vpop.f32.mrf.mxu0
  %v1989 = vadd.f32 %v1900, %v1988
  %v1990 = vpop.f32.mrf.mxu0
  %v1991 = vadd.f32 %v1902, %v1990
  %1992 = vmatmul.bf16.gmra.mxu0 %v1283
  %v1993 = vpop.f32.mrf.mxu0
  %v1994 = vadd.f32 %v1905, %v1993
  %v1995 = vpop.f32.mrf.mxu0
  %v1996 = vadd.f32 %v1907, %v1995
  %1997 = vmatmul.bf16.gmra.mxu0 %v1285
  %v1998 = vpop.f32.mrf.mxu0
  %v1999 = vadd.f32 %v1910, %v1998
  %v2000 = vpop.f32.mrf.mxu0
  %v2001 = vadd.f32 %v1912, %v2000
  %2002 = vmatmul.bf16.gmra.mxu0 %v1287
  %v2003 = vpop.f32.mrf.mxu0
  %v2004 = vadd.f32 %v1915, %v2003
  %v2005 = vpop.f32.mrf.mxu0
  %v2006 = vadd.f32 %v1917, %v2005
  %2007 = vmatmul.bf16.gmra.mxu0 %v1289
  %v2008 = vpop.f32.mrf.mxu0
  %v2009 = vadd.f32 %v1920, %v2008
  %v2010 = vpop.f32.mrf.mxu0
  %v2011 = vadd.f32 %v1922, %v2010
  %2012 = vmatmul.bf16.gmra.mxu0 %v1291
  %v2013 = vpop.f32.mrf.mxu0
  %v2014 = vadd.f32 %v1925, %v2013
  %v2015 = vpop.f32.mrf.mxu0
  %v2016 = vadd.f32 %v1927, %v2015
  %2017 = vmatmul.bf16.gmra.mxu0 %v1293
  %v2018 = vpop.f32.mrf.mxu0
  %v2019 = vadd.f32 %v1930, %v2018
  %v2020 = vpop.f32.mrf.mxu0
  %v2021 = vadd.f32 %v1932, %v2020
  %2022 = vmatmul.bf16.gmra.mxu0 %v1295
  %v2023 = vpop.f32.mrf.mxu0
  %v2024 = vadd.f32 %v1935, %v2023
  %v2025 = vpop.f32.mrf.mxu0
  %v2026 = vadd.f32 %v1937, %v2025
  %2027 = vmatmul.bf16.gmra.mxu0 %v1297
  %v2028 = vpop.f32.mrf.mxu0
  %v2029 = vadd.f32 %v1940, %v2028
  %v2030 = vpop.f32.mrf.mxu0
  %v2031 = vadd.f32 %v1942, %v2030
  %2032 = vmatmul.bf16.gmra.mxu0 %v1299
  %v2033 = vpop.f32.mrf.mxu0
  %v2034 = vadd.f32 %v1945, %v2033
  %v2035 = vpop.f32.mrf.mxu0
  %v2036 = vadd.f32 %v1947, %v2035
  %2037 = vmatmul.bf16.gmra.mxu0 %v1301
  %v2038 = vpop.f32.mrf.mxu0
  %v2039 = vadd.f32 %v1950, %v2038
  %v2040 = vpop.f32.mrf.mxu0
  %v2041 = vadd.f32 %v1952, %v2040
  %2042 = vmatmul.bf16.gmra.mxu0 %v1303
  %v2043 = vpop.f32.mrf.mxu0
  %v2044 = vadd.f32 %v1955, %v2043
  %v2045 = vpop.f32.mrf.mxu0
  %v2046 = vadd.f32 %v1957, %v2045
  %2047 = vdwg.mxu0
  %v2048 = vmax.f32 %v1435, 0.0
  %v2049 = vmax.f32 %v1613, 0.0
  %v2050 = vmax.f32 %v1791, 0.0
  %v2051 = vmax.f32 %v1969, 0.0
  %v2052 = vmax.f32 %v1437, 0.0
  %v2053 = vmax.f32 %v1615, 0.0
  %v2054 = vmax.f32 %v1793, 0.0
  %v2055 = vmax.f32 %v1971, 0.0
  %v2056 = vmax.f32 %v1440, 0.0
  %v2057 = vmax.f32 %v1618, 0.0
  %v2058 = vmax.f32 %v1796, 0.0
  %v2059 = vmax.f32 %v1974, 0.0
  %v2060 = vmax.f32 %v1442, 0.0
  %v2061 = vmax.f32 %v1620, 0.0
  %v2062 = vmax.f32 %v1798, 0.0
  %v2063 = vmax.f32 %v1976, 0.0
  %v2064 = vmax.f32 %v1445, 0.0
  %v2065 = vmax.f32 %v1623, 0.0
  %v2066 = vmax.f32 %v1801, 0.0
  %v2067 = vmax.f32 %v1979, 0.0
  %v2068 = vmax.f32 %v1447, 0.0
  %v2069 = vmax.f32 %v1625, 0.0
  %v2070 = vmax.f32 %v1803, 0.0
  %v2071 = vmax.f32 %v1981, 0.0
  %v2072 = vmax.f32 %v1450, 0.0
  %v2073 = vmax.f32 %v1628, 0.0
  %v2074 = vmax.f32 %v1806, 0.0
  %v2075 = vmax.f32 %v1984, 0.0
  %v2076 = vmax.f32 %v1452, 0.0
  %v2077 = vmax.f32 %v1630, 0.0
  %v2078 = vmax.f32 %v1808, 0.0
  %v2079 = vmax.f32 %v1986, 0.0
  %v2080 = vmax.f32 %v1455, 0.0
  %v2081 = vmax.f32 %v1633, 0.0
  %v2082 = vmax.f32 %v1811, 0.0
  %v2083 = vmax.f32 %v1989, 0.0
  %v2084 = vmax.f32 %v1457, 0.0
  %v2085 = vmax.f32 %v1635, 0.0
  %v2086 = vmax.f32 %v1813, 0.0
  %v2087 = vmax.f32 %v1991, 0.0
  %v2088 = vmax.f32 %v1460, 0.0
  %v2089 = vmax.f32 %v1638, 0.0
  %v2090 = vmax.f32 %v1816, 0.0
  %v2091 = vmax.f32 %v1994, 0.0
  %v2092 = vmax.f32 %v1462, 0.0
  %v2093 = vmax.f32 %v1640, 0.0
  %v2094 = vmax.f32 %v1818, 0.0
  %v2095 = vmax.f32 %v1996, 0.0
  %v2096 = vmax.f32 %v1465, 0.0
  %v2097 = vmax.f32 %v1643, 0.0
  %v2098 = vmax.f32 %v1821, 0.0
  %v2099 = vmax.f32 %v1999, 0.0
  %v2100 = vmax.f32 %v1467, 0.0
  %v2101 = vmax.f32 %v1645, 0.0
  %v2102 = vmax.f32 %v1823, 0.0
  %v2103 = vmax.f32 %v2001, 0.0
  %v2104 = vmax.f32 %v1470, 0.0
  %v2105 = vmax.f32 %v1648, 0.0
  %v2106 = vmax.f32 %v1826, 0.0
  %v2107 = vmax.f32 %v2004, 0.0
  %v2108 = vmax.f32 %v1472, 0.0
  %v2109 = vmax.f32 %v1650, 0.0
  %v2110 = vmax.f32 %v1828, 0.0
  %v2111 = vmax.f32 %v2006, 0.0
  %v2112 = vmax.f32 %v1475, 0.0
  %v2113 = vmax.f32 %v1653, 0.0
  %v2114 = vmax.f32 %v1831, 0.0
  %v2115 = vmax.f32 %v2009, 0.0
  %v2116 = vmax.f32 %v1477, 0.0
  %v2117 = vmax.f32 %v1655, 0.0
  %v2118 = vmax.f32 %v1833, 0.0
  %v2119 = vmax.f32 %v2011, 0.0
  %v2120 = vmax.f32 %v1480, 0.0
  %v2121 = vmax.f32 %v1658, 0.0
  %v2122 = vmax.f32 %v1836, 0.0
  %v2123 = vmax.f32 %v2014, 0.0
  %v2124 = vmax.f32 %v1482, 0.0
  %v2125 = vmax.f32 %v1660, 0.0
  %v2126 = vmax.f32 %v1838, 0.0
  %v2127 = vmax.f32 %v2016, 0.0
  %v2128 = vmax.f32 %v1485, 0.0
  %v2129 = vmax.f32 %v1663, 0.0
  %v2130 = vmax.f32 %v1841, 0.0
  %v2131 = vmax.f32 %v2019, 0.0
  %v2132 = vmax.f32 %v1487, 0.0
  %v2133 = vmax.f32 %v1665, 0.0
  %v2134 = vmax.f32 %v1843, 0.0
  %v2135 = vmax.f32 %v2021, 0.0
  %v2136 = vmax.f32 %v1490, 0.0
  %v2137 = vmax.f32 %v1668, 0.0
  %v2138 = vmax.f32 %v1846, 0.0
  %v2139 = vmax.f32 %v2024, 0.0
  %v2140 = vmax.f32 %v1492, 0.0
  %v2141 = vmax.f32 %v1670, 0.0
  %v2142 = vmax.f32 %v1848, 0.0
  %v2143 = vmax.f32 %v2026, 0.0
  %v2144 = vmax.f32 %v1495, 0.0
  %v2145 = vmax.f32 %v1673, 0.0
  %v2146 = vmax.f32 %v1851, 0.0
  %v2147 = vmax.f32 %v2029, 0.0
  %v2148 = vmax.f32 %v1497, 0.0
  %v2149 = vmax.f32 %v1675, 0.0
  %v2150 = vmax.f32 %v1853, 0.0
  %v2151 = vmax.f32 %v2031, 0.0
  %v2152 = vmax.f32 %v1500, 0.0
  %v2153 = vmax.f32 %v1678, 0.0
  %v2154 = vmax.f32 %v1856, 0.0
  %v2155 = vmax.f32 %v2034, 0.0
  %v2156 = vmax.f32 %v1502, 0.0
  %v2157 = vmax.f32 %v1680, 0.0
  %v2158 = vmax.f32 %v1858, 0.0
  %v2159 = vmax.f32 %v2036, 0.0
  %v2160 = vmax.f32 %v1505, 0.0
  %v2161 = vmax.f32 %v1683, 0.0
  %v2162 = vmax.f32 %v1861, 0.0
  %v2163 = vmax.f32 %v2039, 0.0
  %v2164 = vmax.f32 %v1507, 0.0
  %v2165 = vmax.f32 %v1685, 0.0
  %v2166 = vmax.f32 %v1863, 0.0
  %v2167 = vmax.f32 %v2041, 0.0
  %v2168 = vmax.f32 %v1510, 0.0
  %v2169 = vmax.f32 %v1688, 0.0
  %v2170 = vmax.f32 %v1866, 0.0
  %v2171 = vmax.f32 %v2044, 0.0
  %v2172 = vmax.f32 %v1512, 0.0
  %v2173 = vmax.f32 %v1690, 0.0
  %v2174 = vmax.f32 %v1868, 0.0
  %v2175 = vmax.f32 %v2046, 0.0
  %v2176 = vpack.c.bf16 %v2052, %v2048
  %v2177 = vpack.c.bf16 %v2053, %v2049
  %v2178 = vpack.c.bf16 %v2054, %v2050
  %v2179 = vpack.c.bf16 %v2055, %v2051
  %v2180 = vpack.c.bf16 %v2060, %v2056
  %v2181 = vpack.c.bf16 %v2061, %v2057
  %v2182 = vpack.c.bf16 %v2062, %v2058
  %v2183 = vpack.c.bf16 %v2063, %v2059
  %v2184 = vpack.c.bf16 %v2068, %v2064
  %v2185 = vpack.c.bf16 %v2069, %v2065
  %v2186 = vpack.c.bf16 %v2070, %v2066
  %v2187 = vpack.c.bf16 %v2071, %v2067
  %v2188 = vpack.c.bf16 %v2076, %v2072
  %v2189 = vpack.c.bf16 %v2077, %v2073
  %v2190 = vpack.c.bf16 %v2078, %v2074
  %v2191 = vpack.c.bf16 %v2079, %v2075
  %v2192 = vpack.c.bf16 %v2084, %v2080
  %v2193 = vpack.c.bf16 %v2085, %v2081
  %v2194 = vpack.c.bf16 %v2086, %v2082
  %v2195 = vpack.c.bf16 %v2087, %v2083
  %v2196 = vpack.c.bf16 %v2092, %v2088
  %v2197 = vpack.c.bf16 %v2093, %v2089
  %v2198 = vpack.c.bf16 %v2094, %v2090
  %v2199 = vpack.c.bf16 %v2095, %v2091
  %v2200 = vpack.c.bf16 %v2100, %v2096
  %v2201 = vpack.c.bf16 %v2101, %v2097
  %v2202 = vpack.c.bf16 %v2102, %v2098
  %v2203 = vpack.c.bf16 %v2103, %v2099
  %v2204 = vpack.c.bf16 %v2108, %v2104
  %v2205 = vpack.c.bf16 %v2109, %v2105
  %v2206 = vpack.c.bf16 %v2110, %v2106
  %v2207 = vpack.c.bf16 %v2111, %v2107
  %v2208 = vpack.c.bf16 %v2116, %v2112
  %v2209 = vpack.c.bf16 %v2117, %v2113
  %v2210 = vpack.c.bf16 %v2118, %v2114
  %v2211 = vpack.c.bf16 %v2119, %v2115
  %v2212 = vpack.c.bf16 %v2124, %v2120
  %v2213 = vpack.c.bf16 %v2125, %v2121
  %v2214 = vpack.c.bf16 %v2126, %v2122
  %v2215 = vpack.c.bf16 %v2127, %v2123
  %v2216 = vpack.c.bf16 %v2132, %v2128
  %v2217 = vpack.c.bf16 %v2133, %v2129
  %v2218 = vpack.c.bf16 %v2134, %v2130
  %v2219 = vpack.c.bf16 %v2135, %v2131
  %v2220 = vpack.c.bf16 %v2140, %v2136
  %v2221 = vpack.c.bf16 %v2141, %v2137
  %v2222 = vpack.c.bf16 %v2142, %v2138
  %v2223 = vpack.c.bf16 %v2143, %v2139
  %v2224 = vpack.c.bf16 %v2148, %v2144
  %v2225 = vpack.c.bf16 %v2149, %v2145
  %v2226 = vpack.c.bf16 %v2150, %v2146
  %v2227 = vpack.c.bf16 %v2151, %v2147
  %v2228 = vpack.c.bf16 %v2156, %v2152
  %v2229 = vpack.c.bf16 %v2157, %v2153
  %v2230 = vpack.c.bf16 %v2158, %v2154
  %v2231 = vpack.c.bf16 %v2159, %v2155
  %v2232 = vpack.c.bf16 %v2164, %v2160
  %v2233 = vpack.c.bf16 %v2165, %v2161
  %v2234 = vpack.c.bf16 %v2166, %v2162
  %v2235 = vpack.c.bf16 %v2167, %v2163
  %v2236 = vpack.c.bf16 %v2172, %v2168
  %v2237 = vpack.c.bf16 %v2173, %v2169
  %v2238 = vpack.c.bf16 %v2174, %v2170
  %v2239 = vpack.c.bf16 %v2175, %v2171
  %v2240 = vld [vmem:[%s5] sm:$0xff]
  %v2241 = vld [vmem:[%s6] sm:$0xff]
  %2243 = vset.pattern.permute.xlu0 0
  %2244 = vperm.xlu0 %2243, %v2241
  %v2245 = vpop.permute.xlu0 %2244
  %v2248 = vunpack.c.l.b16 %v2240
  %v2249 = vunpack.c.h.b16 %v2240
  %v2250 = vpack.c.b16 %v2248, %v2248
  %v2251 = vpack.c.b16 %v2249, %v2249
  %2254 = vmatpush.bf16.msra.mxu0 %v2204
  %2255 = vmatpush.bf16.msra.mxu0 %v2200
  %2256 = vmatpush.bf16.msra.mxu0 %v2196
  %2257 = vmatpush.bf16.msra.mxu0 %v2192
  %2258 = vmatpush.bf16.msra.mxu0 %v2188
  %2259 = vmatpush.bf16.msra.mxu0 %v2184
  %2260 = vmatpush.bf16.msra.mxu0 %v2180
  %2261 = vmatpush.bf16.msra.mxu0 %v2176
  %2262 = vmatmul.bf16.gmra.mxu0 %v2250
  %v2263 = vpop.f32.mrf.mxu0
  %v2264 = vadd.f32 %v2245, %v2263
  %v2265 = vpop.f32.mrf.mxu0
  %2266 = vdwg.mxu0
  %2267 = vmatpush.bf16.msra.mxu0 %v2236
  %2268 = vmatpush.bf16.msra.mxu0 %v2232
  %2269 = vmatpush.bf16.msra.mxu0 %v2228
  %2270 = vmatpush.bf16.msra.mxu0 %v2224
  %2271 = vmatpush.bf16.msra.mxu0 %v2220
  %2272 = vmatpush.bf16.msra.mxu0 %v2216
  %2273 = vmatpush.bf16.msra.mxu0 %v2212
  %2274 = vmatpush.bf16.msra.mxu0 %v2208
  %2275 = vmatmul.bf16.gmra.mxu0 %v2251
  %v2276 = vpop.f32.mrf.mxu0
  %v2277 = vadd.f32 %v2264, %v2276
  %v2278 = vpop.f32.mrf.mxu0
  %2279 = vdwg.mxu0
  %2280 = vmatpush.bf16.msra.mxu0 %v2205
  %2281 = vmatpush.bf16.msra.mxu0 %v2201
  %2282 = vmatpush.bf16.msra.mxu0 %v2197
  %2283 = vmatpush.bf16.msra.mxu0 %v2193
  %2284 = vmatpush.bf16.msra.mxu0 %v2189
  %2285 = vmatpush.bf16.msra.mxu0 %v2185
  %2286 = vmatpush.bf16.msra.mxu0 %v2181
  %2287 = vmatpush.bf16.msra.mxu0 %v2177
  %2288 = vmatmul.bf16.gmra.mxu0 %v2250
  %v2289 = vpop.f32.mrf.mxu0
  %v2290 = vadd.f32 %v2245, %v2289
  %v2291 = vpop.f32.mrf.mxu0
  %2292 = vdwg.mxu0
  %2293 = vmatpush.bf16.msra.mxu0 %v2237
  %2294 = vmatpush.bf16.msra.mxu0 %v2233
  %2295 = vmatpush.bf16.msra.mxu0 %v2229
  %2296 = vmatpush.bf16.msra.mxu0 %v2225
  %2297 = vmatpush.bf16.msra.mxu0 %v2221
  %2298 = vmatpush.bf16.msra.mxu0 %v2217
  %2299 = vmatpush.bf16.msra.mxu0 %v2213
  %2300 = vmatpush.bf16.msra.mxu0 %v2209
  %2301 = vmatmul.bf16.gmra.mxu0 %v2251
  %v2302 = vpop.f32.mrf.mxu0
  %v2303 = vadd.f32 %v2290, %v2302
  %v2304 = vpop.f32.mrf.mxu0
  %2305 = vdwg.mxu0
  %2306 = vmatpush.bf16.msra.mxu0 %v2206
  %2307 = vmatpush.bf16.msra.mxu0 %v2202
  %2308 = vmatpush.bf16.msra.mxu0 %v2198
  %2309 = vmatpush.bf16.msra.mxu0 %v2194
  %2310 = vmatpush.bf16.msra.mxu0 %v2190
  %2311 = vmatpush.bf16.msra.mxu0 %v2186
  %2312 = vmatpush.bf16.msra.mxu0 %v2182
  %2313 = vmatpush.bf16.msra.mxu0 %v2178
  %2314 = vmatmul.bf16.gmra.mxu0 %v2250
  %v2315 = vpop.f32.mrf.mxu0
  %v2316 = vadd.f32 %v2245, %v2315
  %v2317 = vpop.f32.mrf.mxu0
  %2318 = vdwg.mxu0
  %2319 = vmatpush.bf16.msra.mxu0 %v2238
  %2320 = vmatpush.bf16.msra.mxu0 %v2234
  %2321 = vmatpush.bf16.msra.mxu0 %v2230
  %2322 = vmatpush.bf16.msra.mxu0 %v2226
  %2323 = vmatpush.bf16.msra.mxu0 %v2222
  %2324 = vmatpush.bf16.msra.mxu0 %v2218
  %2325 = vmatpush.bf16.msra.mxu0 %v2214
  %2326 = vmatpush.bf16.msra.mxu0 %v2210
  %2327 = vmatmul.bf16.gmra.mxu0 %v2251
  %v2328 = vpop.f32.mrf.mxu0
  %v2329 = vadd.f32 %v2316, %v2328
  %v2330 = vpop.f32.mrf.mxu0
  %2331 = vdwg.mxu0
  %2332 = vmatpush.bf16.msra.mxu0 %v2207
  %2333 = vmatpush.bf16.msra.mxu0 %v2203
  %2334 = vmatpush.bf16.msra.mxu0 %v2199
  %2335 = vmatpush.bf16.msra.mxu0 %v2195
  %2336 = vmatpush.bf16.msra.mxu0 %v2191
  %2337 = vmatpush.bf16.msra.mxu0 %v2187
  %2338 = vmatpush.bf16.msra.mxu0 %v2183
  %2339 = vmatpush.bf16.msra.mxu0 %v2179
  %2340 = vmatmul.bf16.gmra.mxu0 %v2250
  %v2341 = vpop.f32.mrf.mxu0
  %v2342 = vadd.f32 %v2245, %v2341
  %v2343 = vpop.f32.mrf.mxu0
  %2344 = vdwg.mxu0
  %2345 = vmatpush.bf16.msra.mxu0 %v2239
  %2346 = vmatpush.bf16.msra.mxu0 %v2235
  %2347 = vmatpush.bf16.msra.mxu0 %v2231
  %2348 = vmatpush.bf16.msra.mxu0 %v2227
  %2349 = vmatpush.bf16.msra.mxu0 %v2223
  %2350 = vmatpush.bf16.msra.mxu0 %v2219
  %2351 = vmatpush.bf16.msra.mxu0 %v2215
  %2352 = vmatpush.bf16.msra.mxu0 %v2211
  %2353 = vmatmul.bf16.gmra.mxu0 %v2251
  %v2354 = vpop.f32.mrf.mxu0
  %v2355 = vadd.f32 %v2342, %v2354
  %v2356 = vpop.f32.mrf.mxu0
  %2357 = vdwg.mxu0
  %2358 = vst [vmem:[%s7] sm:$0xff] %v2277
  %2359 = vst [vmem:[%s7 + $0x8] sm:$0xff] %v2303
  %2360 = vst [vmem:[%s7 + $0x10] sm:$0xff] %v2329
  %2361 = vst [vmem:[%s7 + $0x18] sm:$0xff] %v2355
  // Predicated region
  $region30: #{policy_net_forward.1} parent=0 // pred_check
    _
  $region31: #{policy_net_forward.1} parent=0 // pred_check_branch
    %2363 = sbr.rel (0) target = $region33
  $region32: #{policy_net_forward.1} parent=0 // pred_region
    _
  $region33: #{policy_net_forward.1} parent=0 // pred_fallthru
    _
  // Predicated region
  $region34: #{policy_net_forward.1} parent=0 // pred_check
    _
  $region35: #{policy_net_forward.1} parent=0 // pred_check_branch
    %2365 = sbr.rel (0) target = $region37
  $region36: #{policy_net_forward.1} parent=0 // pred_region
    _
  $region37: #{policy_net_forward.1} parent=0 // pred_fallthru
    _

</llo_original>
